<compile_context>
chip_gen: v7x
topology: tpu7x:2x2x1
jax: 0.10.0
libtpu: 0.0.40
codegen_flags: <defaults>
</compile_context>

<pallas_src>
import functools

import jax
import jax.numpy as jnp
from jax.experimental import pallas as pl
from jax.experimental.pallas import tpu as pltpu


# -----------------------------------------------------------------------------
# Fused kernel: 1x1 conv (+bias, ReLU)  ->  padded VMEM intermediate  ->
#               3x3 conv (stride s) (+bias)
# -----------------------------------------------------------------------------
def _one_three_fused_kernel(x_core_ref, x_above_ref, x_below_ref,
                            w1_ref, b1_ref, w2_ref, b2_ref,
                            o_ref, mid_ref, acc_ref, *,
                            stride, tile_h, W, Wo, Cmid, Cout):
    s = stride
    th = tile_h
    t = pl.program_id(1)
    num_t = pl.num_programs(1)
    hin = th * s + 2          # rows of padded intermediate held in VMEM
    Wp = W + 2
    zdt = mid_ref.dtype

    # --- zero the padding borders of the intermediate scratch ----------------
    mid_ref[:, 0:1, :] = jnp.zeros((hin, 1, Cmid), zdt)
    mid_ref[:, Wp - 1:Wp, :] = jnp.zeros((hin, 1, Cmid), zdt)
    mid_ref[0:1, :, :] = jnp.zeros((1, Wp, Cmid), zdt)
    mid_ref[hin - 1:hin, :, :] = jnp.zeros((1, Wp, Cmid), zdt)

    # --- stage 1: 1x1 conv (BN scale pre-folded into w1) + bias + ReLU -------
    w1 = w1_ref[...]
    b1 = b1_ref[...]

    def pointwise(rows_2d):
        a = jnp.dot(rows_2d, w1, preferred_element_type=jnp.float32)
        return jnp.maximum(a + b1, 0.0).astype(zdt)

    x_core = x_core_ref[0]                                   # (th*s, W, Cin)
    Cin = x_core.shape[-1]
    core = pointwise(x_core.reshape(th * s * W, Cin)).reshape(th * s, W, Cmid)
    mid_ref[1:1 + th * s, 1:W + 1, :] = core

    @pl.when(t > 0)                                          # halo row above
    def _():
        mid_ref[0, 1:W + 1, :] = pointwise(x_above_ref[0, 0])

    if s == 1:                                               # halo row below
        @pl.when(t < num_t - 1)
        def _():
            mid_ref[hin - 1, 1:W + 1, :] = pointwise(x_below_ref[0, 0])

    # --- stage 2: 3x3 conv (BN scale pre-folded into w2) + bias --------------
    if s == 1:
        # contraction deepened to 3*Cmid: concatenate the 3 kx taps on channels
        for ky in range(3):
            taps = jnp.concatenate(
                [mid_ref[ky:ky + th, kx:kx + Wo, :] for kx in range(3)], axis=-1)
            contrib = jnp.dot(taps.reshape(th * Wo, 3 * Cmid), w2_ref[ky],
                              preferred_element_type=jnp.float32)
            if ky == 0:
                acc_ref[...] = contrib
            else:
                acc_ref[...] += contrib
    else:
        # TODO(synk): stride-2 path still uses 9 shallow taps; split even/odd
        # columns to recover the deep-contraction form.
        mid = mid_ref[...]
        first = True
        for ky in range(3):
            for kx in range(3):
                patch = mid[ky:ky + (th - 1) * s + 1:s,
                            kx:kx + (Wo - 1) * s + 1:s, :]
                contrib = jnp.dot(patch.reshape(th * Wo, Cmid),
                                  w2_ref[ky, kx * Cmid:(kx + 1) * Cmid, :],
                                  preferred_element_type=jnp.float32)
                acc_ref[...] = contrib if first else acc_ref[...] + contrib
                first = False

    out = acc_ref[...] + b2_ref[...]
    o_ref[0] = out.reshape(th, Wo, Cout).astype(o_ref.dtype)


# -----------------------------------------------------------------------------
# Tile selection: largest output-row tile (divisor of Ho) under a VMEM budget.
# -----------------------------------------------------------------------------
def _pick_tile_h(Ho, Wo, W, Cin, Cmid, Cout, stride, itemsize,
                 vmem_budget=4 * 1024 * 1024):
    cands = [d for d in range(8, Ho + 1, 8) if Ho % d == 0]
    if Ho not in cands:
        cands.append(Ho)

    def step_bytes(th):
        core = th * stride * W * Cin * itemsize
        halo = 2 * W * Cin * itemsize
        outb = th * Wo * Cout * 4
        midb = (th * stride + 2) * (W + 2) * Cmid * itemsize
        accb = th * Wo * Cout * 4
        # auto-pipelined inputs/outputs are double-buffered; scratch is not
        return 2 * (core + halo + outb) + midb + accb

    fitting = sorted(th for th in cands if step_bytes(th) <= vmem_budget)
    if not fitting:
        return min(cands)
    th = fitting[-1]
    if th == Ho and len(fitting) > 1:
        th = fitting[-2]   # keep >= 2 row tiles: pipelining + both v7x TensorCores busy
    return th


# -----------------------------------------------------------------------------
# Forward (NHWC, preferred) and NCHW wrapper for PyTorch-layout parity.
# -----------------------------------------------------------------------------
def one_three_conv_forward_nhwc(kparams, x_nhwc, *, stride=1,
                                compute_dtype=jnp.float32):
    w1, b1 = kparams["w1"], kparams["b1"]
    w2, b2 = kparams["w2"], kparams["b2"]
    N, H, W, Cin = x_nhwc.shape
    Cmid = w1.shape[1]
    Cout = w2.shape[-1]
    s = stride
    assert s in (1, 2), "One_Three_Conv uses stride 1 or 2"
    # TODO(synk): handle H/W not divisible by the stride (ragged bottom/right tile).
    assert H % s == 0 and W % s == 0
    Ho, Wo = H // s, W // s

    itemsize = jnp.dtype(compute_dtype).itemsize
    th = _pick_tile_h(Ho, Wo, W, Cin, Cmid, Cout, s, itemsize)
    num_t = Ho // th
    ths = th * s

    xc = x_nhwc.astype(compute_dtype)
    w1c = w1.astype(compute_dtype)
    w2c = w2.astype(compute_dtype)
    b1f = b1.astype(jnp.float32)
    b2f = b2.astype(jnp.float32)

    kernel = functools.partial(
        _one_three_fused_kernel, stride=s, tile_h=th, W=W, Wo=Wo,
        Cmid=Cmid, Cout=Cout)

    return pl.pallas_call(
        kernel,
        out_shape=jax.ShapeDtypeStruct((N, Ho, Wo, Cout), x_nhwc.dtype),
        grid_spec=pltpu.PrefetchScalarGridSpec(
            num_scalar_prefetch=0,
            grid=(N, num_t),
            in_specs=[
                # core input rows of this output tile
                pl.BlockSpec((1, ths, W, Cin), lambda n, t: (n, t, 0, 0)),
                # 1-row halo above (clamped at the top; zeroed in-kernel at t==0)
                pl.BlockSpec((1, 1, W, Cin),
                             lambda n, t: (n, jnp.maximum(t * ths - 1, 0), 0, 0)),
                # 1-row halo below (clamped at the bottom; zeroed at t==last)
                pl.BlockSpec((1, 1, W, Cin),
                             lambda n, t: (n, jnp.minimum((t + 1) * ths, H - 1), 0, 0)),
                pl.BlockSpec((Cin, Cmid), lambda n, t: (0, 0)),
                pl.BlockSpec((1, Cmid), lambda n, t: (0, 0)),
                pl.BlockSpec((3, 3 * Cmid, Cout), lambda n, t: (0, 0, 0)),
                pl.BlockSpec((1, Cout), lambda n, t: (0, 0)),
            ],
            out_specs=pl.BlockSpec((1, th, Wo, Cout), lambda n, t: (n, t, 0, 0)),
            scratch_shapes=[
                pltpu.VMEM((ths + 2, W + 2, Cmid), compute_dtype),  # padded intermediate
                pltpu.VMEM((th * Wo, Cout), jnp.float32),           # conv-2 accumulator
            ],
        ),
        compiler_params=pltpu.CompilerParams(
            dimension_semantics=("parallel", "parallel")),
    )(xc, xc, xc, w1c, b1f, w2c, b2f)


@functools.partial(jax.jit, static_argnames=("stride", "compute_dtype"))
def one_three_conv_forward(kparams, x_nchw, *, stride=1,
                           compute_dtype=jnp.float32):
    """PyTorch-layout (NCHW) entry point; the transposes are layout glue only."""
    x = jnp.transpose(x_nchw, (0, 2, 3, 1))
    y = one_three_conv_forward_nhwc(kparams, x, stride=stride,
                                    compute_dtype=compute_dtype)
    return jnp.transpose(y, (0, 3, 1, 2))


# -----------------------------------------------------------------------------
# Parameters: raw (PyTorch-equivalent) params + one-time BN folding/packing.
# -----------------------------------------------------------------------------
def init_one_three_conv_params(key, in_planes, out_planes):
    """Deterministic parameters mirroring the PyTorch module (eval-mode BN)."""
    inter = in_planes // 4
    k1, k2, k3, k4 = jax.random.split(key, 4)
    return {
        # conv1: PyTorch (inter, in, 1, 1) stored as (in, inter)
        "w1_raw": (0.1 * jax.random.normal(k1, (in_planes, inter))).astype(jnp.float32),
        "bn1": (1.0 + 0.01 * jnp.arange(inter, dtype=jnp.float32),       # gamma
                0.02 * jnp.arange(inter, dtype=jnp.float32),             # beta
                0.05 * jax.random.normal(k2, (inter,)),                  # running mean
                1.0 + 0.1 * jnp.abs(jax.random.normal(k3, (inter,)))),   # running var
        # conv2: PyTorch (out, inter, 3, 3) stored HWIO (3, 3, inter, out)
        "w2_raw": (0.1 * jax.random.normal(k4, (3, 3, inter, out_planes))).astype(jnp.float32),
        "bn2": (1.0 - 0.005 * jnp.arange(out_planes, dtype=jnp.float32),
                -0.01 * jnp.arange(out_planes, dtype=jnp.float32),
                0.03 * jnp.ones((out_planes,), jnp.float32),
                1.0 + 0.05 * jnp.arange(out_planes, dtype=jnp.float32)),
    }


def prepare_kernel_params(params, eps=1e-5):
    """Fold eval-mode BN into the conv weights (one-time, host side)."""
    # TODO(synk): training-mode BatchNorm (batch statistics / running-stat update)
    # is not implemented; only eval-mode BN, folded into the conv weights.
    g1, be1, m1, v1 = params["bn1"]
    s1 = g1 / jnp.sqrt(v1 + eps)
    g2, be2, m2, v2 = params["bn2"]
    s2 = g2 / jnp.sqrt(v2 + eps)

    w1 = params["w1_raw"] * s1[None, :]                        # (Cin, Cmid)
    w2 = params["w2_raw"] * s2[None, None, None, :]            # (3, 3, Cmid, Cout)
    Cmid, Cout = w1.shape[1], w2.shape[-1]
    return {
        "w1": w1.astype(jnp.float32),
        "b1": (be1 - m1 * s1)[None, :].astype(jnp.float32),
        # packed (ky, kx*Cmid + c, Cout) to match the in-kernel kx-concat order
        "w2": w2.reshape(3, 3 * Cmid, Cout).astype(jnp.float32),
        "b2": (be2 - m2 * s2)[None, :].astype(jnp.float32),
    }


# -----------------------------------------------------------------------------
# Pure-JAX reference (lax conv + unfolded BN) for correctness checking.
# -----------------------------------------------------------------------------
def reference_forward(params, x_nchw, *, stride=1, eps=1e-5):
    def bn(y, p):
        g, b, m, v = p
        sc = (g / jnp.sqrt(v + eps))[None, :, None, None]
        return (y - m[None, :, None, None]) * sc + b[None, :, None, None]

    x = x_nchw.astype(jnp.float32)
    w1 = jnp.transpose(params["w1_raw"], (1, 0))[:, :, None, None]         # OIHW
    y = jax.lax.conv_general_dilated(
        x, w1, (1, 1), "VALID", dimension_numbers=("NCHW", "OIHW", "NCHW"))
    y = jnp.maximum(bn(y, params["bn1"]), 0.0)
    w2 = jnp.transpose(params["w2_raw"], (3, 2, 0, 1))                     # OIHW
    z = jax.lax.conv_general_dilated(
        y, w2, (stride, stride), ((1, 1), (1, 1)),
        dimension_numbers=("NCHW", "OIHW", "NCHW"))
    return bn(z, params["bn2"])


if __name__ == "__main__":
    key = jax.random.PRNGKey(0)
    k_param, k_x = jax.random.split(key)

    N, in_planes, H, W = 2, 16, 16, 16
    out_planes, stride = 32, 1

    params = init_one_three_conv_params(k_param, in_planes, out_planes)
    kparams = prepare_kernel_params(params)
    x = jax.random.normal(k_x, (N, in_planes, H, W), dtype=jnp.float32)

    ref = jax.block_until_ready(reference_forward(params, x, stride=stride))

    # f32 operands
    out = jax.block_until_ready(one_three_conv_forward(kparams, x, stride=stride))
    assert out.shape == (N, out_planes, H // stride, W // stride), out.shape
    err = float(jnp.max(jnp.abs(out - ref)))
    assert err < 1e-3, f"f32 max abs err {err}"

    # bf16 operands (v6e/v7x MXU native), f32 accumulation
    out_bf16 = jax.block_until_ready(
        one_three_conv_forward(kparams, x, stride=stride,
                               compute_dtype=jnp.bfloat16))
    err_bf16 = float(jnp.max(jnp.abs(out_bf16 - ref)))
    assert err_bf16 < 5e-2, f"bf16 max abs err {err_bf16}"

    print("KERNEL_OK")
</pallas_src>

<mosaic_0001>
module attributes {stable_mosaic.version = 11 : i64} {
  func.func @_one_three_fused_kernel(%arg0: i32, %arg1: i32, %arg2: memref<1x8x16x16xf32, #tpu.memory_space<vmem>>, %arg3: memref<1x1x16x16xf32, #tpu.memory_space<vmem>>, %arg4: memref<1x1x16x16xf32, #tpu.memory_space<vmem>>, %arg5: memref<16x4xf32, #tpu.memory_space<vmem>>, %arg6: memref<1x4xf32, #tpu.memory_space<vmem>>, %arg7: memref<3x12x32xf32, #tpu.memory_space<vmem>>, %arg8: memref<1x32xf32, #tpu.memory_space<vmem>>, %arg9: memref<1x8x16x32xf32, #tpu.memory_space<vmem>>, %arg10: memref<10x18x4xf32, #tpu.memory_space<vmem>>, %arg11: memref<128x32xf32, #tpu.memory_space<vmem>>) attributes {dimension_semantics = [#tpu.dimension_semantics<parallel>, #tpu.dimension_semantics<parallel>], iteration_bounds = array<i64: 2, 2>, scalar_prefetch = 0 : i64, scratch_operands = 2 : i64, tpu.core_type = #tpu.core_type<tc>, window_params = [{transform_indices = @transform_0, window_bounds = array<i64: 1, 8, 16, 16>}, {transform_indices = @transform_1, window_bounds = array<i64: 1, 1, 16, 16>}, {transform_indices = @transform_2, window_bounds = array<i64: 1, 1, 16, 16>}, {pipeline_mode = #tpu.pipeline_mode<synchronous>, transform_indices = @transform_3, window_bounds = array<i64: 16, 4>}, {pipeline_mode = #tpu.pipeline_mode<synchronous>, transform_indices = @transform_4, window_bounds = array<i64: 1, 4>}, {pipeline_mode = #tpu.pipeline_mode<synchronous>, transform_indices = @transform_5, window_bounds = array<i64: 3, 12, 32>}, {pipeline_mode = #tpu.pipeline_mode<synchronous>, transform_indices = @transform_6, window_bounds = array<i64: 1, 32>}, {transform_indices = @transform_7, window_bounds = array<i64: 1, 8, 16, 32>}]} {
    %cst = arith.constant 0.000000e+00 : f32
    %0 = vector.broadcast %cst : f32 to vector<10x1x4xf32>
    %c0 = arith.constant 0 : index
    %c0_0 = arith.constant 0 : index
    %c0_1 = arith.constant 0 : index
    %1 = vector.load %arg10[%c0, %c0_0, %c0_1] : memref<10x18x4xf32, #tpu.memory_space<vmem>>, vector<10x1x4xf32>
    tpu.vector_store %arg10[%c0, %c0_0, %c0_1], %0 {strides = array<i32>} : memref<10x18x4xf32, #tpu.memory_space<vmem>>, vector<10x1x4xf32>,
    %cst_2 = arith.constant 0.000000e+00 : f32
    %2 = vector.broadcast %cst_2 : f32 to vector<10x1x4xf32>
    %c0_3 = arith.constant 0 : index
    %c17 = arith.constant 17 : index
    %c0_4 = arith.constant 0 : index
    %3 = vector.load %arg10[%c0_3, %c17, %c0_4] : memref<10x18x4xf32, #tpu.memory_space<vmem>>, vector<10x1x4xf32>
    tpu.vector_store %arg10[%c0_3, %c17, %c0_4], %2 {strides = array<i32>} : memref<10x18x4xf32, #tpu.memory_space<vmem>>, vector<10x1x4xf32>,
    %cst_5 = arith.constant 0.000000e+00 : f32
    %4 = vector.broadcast %cst_5 : f32 to vector<1x18x4xf32>
    %c0_6 = arith.constant 0 : index
    %c0_7 = arith.constant 0 : index
    %c0_8 = arith.constant 0 : index
    %5 = vector.load %arg10[%c0_6, %c0_7, %c0_8] : memref<10x18x4xf32, #tpu.memory_space<vmem>>, vector<1x18x4xf32>
    tpu.vector_store %arg10[%c0_6, %c0_7, %c0_8], %4 {strides = array<i32>} : memref<10x18x4xf32, #tpu.memory_space<vmem>>, vector<1x18x4xf32>,
    %cst_9 = arith.constant 0.000000e+00 : f32
    %6 = vector.broadcast %cst_9 : f32 to vector<1x18x4xf32>
    %c9 = arith.constant 9 : index
    %c0_10 = arith.constant 0 : index
    %c0_11 = arith.constant 0 : index
    %7 = vector.load %arg10[%c9, %c0_10, %c0_11] : memref<10x18x4xf32, #tpu.memory_space<vmem>>, vector<1x18x4xf32>
    tpu.vector_store %arg10[%c9, %c0_10, %c0_11], %6 {strides = array<i32>} : memref<10x18x4xf32, #tpu.memory_space<vmem>>, vector<1x18x4xf32>,
    %c0_12 = arith.constant 0 : index
    %c0_13 = arith.constant 0 : index
    %8 = vector.load %arg5[%c0_12, %c0_13] : memref<16x4xf32, #tpu.memory_space<vmem>>, vector<16x4xf32>
    %c0_14 = arith.constant 0 : index
    %c0_15 = arith.constant 0 : index
    %9 = vector.load %arg6[%c0_14, %c0_15] : memref<1x4xf32, #tpu.memory_space<vmem>>, vector<1x4xf32>
    %c0_16 = arith.constant 0 : index
    %c0_17 = arith.constant 0 : index
    %c0_18 = arith.constant 0 : index
    %c0_19 = arith.constant 0 : index
    %10 = vector.load %arg2[%c0_16, %c0_17, %c0_18, %c0_19] : memref<1x8x16x16xf32, #tpu.memory_space<vmem>>, vector<1x8x16x16xf32>
    %11 = vector.shape_cast %10 : vector<1x8x16x16xf32> to vector<8x16x16xf32>
    %12 = vector.shape_cast %11 : vector<8x16x16xf32> to vector<128x16xf32>
    %cst_20 = arith.constant dense<0.000000e+00> : vector<128x4xf32>
    %13 = tpu.matmul %12, %8, %cst_20 {dimension_numbers = #tpu.dot_dimension_numbers<[1], [0], [0], [1], [0, 0, 1, 1], [], []>} : vector<128x16xf32>, vector<16x4xf32>, vector<128x4xf32> -> vector<128x4xf32>
    %14 = vector.broadcast %9 : vector<1x4xf32> to vector<128x4xf32>
    %15 = arith.addf %13, %14 : vector<128x4xf32>
    %cst_21 = arith.constant 0.000000e+00 : f32
    %16 = vector.broadcast %cst_21 : f32 to vector<128x4xf32>
    %17 = arith.maximumf %15, %16 : vector<128x4xf32>
    %18 = vector.shape_cast %17 : vector<128x4xf32> to vector<8x16x4xf32>
    %c1 = arith.constant 1 : index
    %c1_22 = arith.constant 1 : index
    %c0_23 = arith.constant 0 : index
    %19 = vector.load %arg10[%c1, %c1_22, %c0_23] : memref<10x18x4xf32, #tpu.memory_space<vmem>>, vector<8x16x4xf32>
    tpu.vector_store %arg10[%c1, %c1_22, %c0_23], %18 {strides = array<i32>} : memref<10x18x4xf32, #tpu.memory_space<vmem>>, vector<8x16x4xf32>,
    %c0_i32 = arith.constant 0 : i32
    %20 = arith.cmpi sgt, %arg1, %c0_i32 : i32
    %21 = arith.extui %20 : i1 to i32
    %c0_i32_24 = arith.constant 0 : i32
    %22 = arith.cmpi ne, %21, %c0_i32_24 : i32
    scf.if %22 {
      %c0_82 = arith.constant 0 : index
      %c0_83 = arith.constant 0 : index
      %c0_84 = arith.constant 0 : index
      %c0_85 = arith.constant 0 : index
      %65 = vector.load %arg3[%c0_82, %c0_83, %c0_84, %c0_85] : memref<1x1x16x16xf32, #tpu.memory_space<vmem>>, vector<1x1x16x16xf32>
      %66 = vector.shape_cast %65 : vector<1x1x16x16xf32> to vector<16x16xf32>
      %cst_86 = arith.constant dense<0.000000e+00> : vector<16x4xf32>
      %67 = tpu.matmul %66, %8, %cst_86 {dimension_numbers = #tpu.dot_dimension_numbers<[1], [0], [0], [1], [0, 0, 1, 1], [], []>} : vector<16x16xf32>, vector<16x4xf32>, vector<16x4xf32> -> vector<16x4xf32>
      %68 = vector.broadcast %9 : vector<1x4xf32> to vector<16x4xf32>
      %69 = arith.addf %67, %68 : vector<16x4xf32>
      %cst_87 = arith.constant 0.000000e+00 : f32
      %70 = vector.broadcast %cst_87 : f32 to vector<16x4xf32>
      %71 = arith.maximumf %69, %70 : vector<16x4xf32>
      %c0_88 = arith.constant 0 : index
      %c1_89 = arith.constant 1 : index
      %c0_90 = arith.constant 0 : index
      %72 = vector.load %arg10[%c0_88, %c1_89, %c0_90] : memref<10x18x4xf32, #tpu.memory_space<vmem>>, vector<1x16x4xf32>
      %73 = vector.shape_cast %72 : vector<1x16x4xf32> to vector<16x4xf32>
      %74 = vector.shape_cast %71 : vector<16x4xf32> to vector<1x16x4xf32>
      tpu.vector_store %arg10[%c0_88, %c1_89, %c0_90], %74 {strides = array<i32>} : memref<10x18x4xf32, #tpu.memory_space<vmem>>, vector<1x16x4xf32>,
    } else {
    }
    %c1_i32 = arith.constant 1 : i32
    %23 = arith.cmpi slt, %arg1, %c1_i32 : i32
    %24 = arith.extui %23 : i1 to i32
    %c0_i32_25 = arith.constant 0 : i32
    %25 = arith.cmpi ne, %24, %c0_i32_25 : i32
    scf.if %25 {
      %c0_82 = arith.constant 0 : index
      %c0_83 = arith.constant 0 : index
      %c0_84 = arith.constant 0 : index
      %c0_85 = arith.constant 0 : index
      %65 = vector.load %arg4[%c0_82, %c0_83, %c0_84, %c0_85] : memref<1x1x16x16xf32, #tpu.memory_space<vmem>>, vector<1x1x16x16xf32>
      %66 = vector.shape_cast %65 : vector<1x1x16x16xf32> to vector<16x16xf32>
      %cst_86 = arith.constant dense<0.000000e+00> : vector<16x4xf32>
      %67 = tpu.matmul %66, %8, %cst_86 {dimension_numbers = #tpu.dot_dimension_numbers<[1], [0], [0], [1], [0, 0, 1, 1], [], []>} : vector<16x16xf32>, vector<16x4xf32>, vector<16x4xf32> -> vector<16x4xf32>
      %68 = vector.broadcast %9 : vector<1x4xf32> to vector<16x4xf32>
      %69 = arith.addf %67, %68 : vector<16x4xf32>
      %cst_87 = arith.constant 0.000000e+00 : f32
      %70 = vector.broadcast %cst_87 : f32 to vector<16x4xf32>
      %71 = arith.maximumf %69, %70 : vector<16x4xf32>
      %c9_88 = arith.constant 9 : index
      %c1_89 = arith.constant 1 : index
      %c0_90 = arith.constant 0 : index
      %72 = vector.load %arg10[%c9_88, %c1_89, %c0_90] : memref<10x18x4xf32, #tpu.memory_space<vmem>>, vector<1x16x4xf32>
      %73 = vector.shape_cast %72 : vector<1x16x4xf32> to vector<16x4xf32>
      %74 = vector.shape_cast %71 : vector<16x4xf32> to vector<1x16x4xf32>
      tpu.vector_store %arg10[%c9_88, %c1_89, %c0_90], %74 {strides = array<i32>} : memref<10x18x4xf32, #tpu.memory_space<vmem>>, vector<1x16x4xf32>,
    } else {
    }
    %c0_26 = arith.constant 0 : index
    %c0_27 = arith.constant 0 : index
    %c0_28 = arith.constant 0 : index
    %26 = vector.load %arg10[%c0_26, %c0_27, %c0_28] : memref<10x18x4xf32, #tpu.memory_space<vmem>>, vector<8x16x4xf32>
    %c0_29 = arith.constant 0 : index
    %c1_30 = arith.constant 1 : index
    %c0_31 = arith.constant 0 : index
    %27 = vector.load %arg10[%c0_29, %c1_30, %c0_31] : memref<10x18x4xf32, #tpu.memory_space<vmem>>, vector<8x16x4xf32>
    %c0_32 = arith.constant 0 : index
    %c2 = arith.constant 2 : index
    %c0_33 = arith.constant 0 : index
    %28 = vector.load %arg10[%c0_32, %c2, %c0_33] : memref<10x18x4xf32, #tpu.memory_space<vmem>>, vector<8x16x4xf32>
    %29 = tpu.concatenate %26, %27, %28 in 2 : vector<8x16x4xf32>, vector<8x16x4xf32>, vector<8x16x4xf32> -> vector<8x16x12xf32>
    %30 = vector.shape_cast %29 : vector<8x16x12xf32> to vector<128x12xf32>
    %c0_34 = arith.constant 0 : index
    %c0_35 = arith.constant 0 : index
    %c0_36 = arith.constant 0 : index
    %31 = vector.load %arg7[%c0_34, %c0_35, %c0_36] : memref<3x12x32xf32, #tpu.memory_space<vmem>>, vector<1x12x32xf32>
    %32 = vector.shape_cast %31 : vector<1x12x32xf32> to vector<12x32xf32>
    %cst_37 = arith.constant dense<0.000000e+00> : vector<128x32xf32>
    %33 = tpu.matmul %30, %32, %cst_37 {dimension_numbers = #tpu.dot_dimension_numbers<[1], [0], [0], [1], [0, 0, 1, 1], [], []>} : vector<128x12xf32>, vector<12x32xf32>, vector<128x32xf32> -> vector<128x32xf32>
    %c0_38 = arith.constant 0 : index
    %c0_39 = arith.constant 0 : index
    %34 = vector.load %arg11[%c0_38, %c0_39] : memref<128x32xf32, #tpu.memory_space<vmem>>, vector<128x32xf32>
    tpu.vector_store %arg11[%c0_38, %c0_39], %33 {strides = array<i32>} : memref<128x32xf32, #tpu.memory_space<vmem>>, vector<128x32xf32>,
    %c1_40 = arith.constant 1 : index
    %c0_41 = arith.constant 0 : index
    %c0_42 = arith.constant 0 : index
    %35 = vector.load %arg10[%c1_40, %c0_41, %c0_42] : memref<10x18x4xf32, #tpu.memory_space<vmem>>, vector<8x16x4xf32>
    %c1_43 = arith.constant 1 : index
    %c1_44 = arith.constant 1 : index
    %c0_45 = arith.constant 0 : index
    %36 = vector.load %arg10[%c1_43, %c1_44, %c0_45] : memref<10x18x4xf32, #tpu.memory_space<vmem>>, vector<8x16x4xf32>
    %c1_46 = arith.constant 1 : index
    %c2_47 = arith.constant 2 : index
    %c0_48 = arith.constant 0 : index
    %37 = vector.load %arg10[%c1_46, %c2_47, %c0_48] : memref<10x18x4xf32, #tpu.memory_space<vmem>>, vector<8x16x4xf32>
    %38 = tpu.concatenate %35, %36, %37 in 2 : vector<8x16x4xf32>, vector<8x16x4xf32>, vector<8x16x4xf32> -> vector<8x16x12xf32>
    %39 = vector.shape_cast %38 : vector<8x16x12xf32> to vector<128x12xf32>
    %c1_49 = arith.constant 1 : index
    %c0_50 = arith.constant 0 : index
    %c0_51 = arith.constant 0 : index
    %40 = vector.load %arg7[%c1_49, %c0_50, %c0_51] : memref<3x12x32xf32, #tpu.memory_space<vmem>>, vector<1x12x32xf32>
    %41 = vector.shape_cast %40 : vector<1x12x32xf32> to vector<12x32xf32>
    %cst_52 = arith.constant dense<0.000000e+00> : vector<128x32xf32>
    %42 = tpu.matmul %39, %41, %cst_52 {dimension_numbers = #tpu.dot_dimension_numbers<[1], [0], [0], [1], [0, 0, 1, 1], [], []>} : vector<128x12xf32>, vector<12x32xf32>, vector<128x32xf32> -> vector<128x32xf32>
    %c0_53 = arith.constant 0 : index
    %c0_54 = arith.constant 0 : index
    %43 = vector.load %arg11[%c0_53, %c0_54] : memref<128x32xf32, #tpu.memory_space<vmem>>, vector<128x32xf32>
    %44 = arith.addf %43, %42 : vector<128x32xf32>
    %c0_55 = arith.constant 0 : index
    %c0_56 = arith.constant 0 : index
    %45 = vector.load %arg11[%c0_55, %c0_56] : memref<128x32xf32, #tpu.memory_space<vmem>>, vector<128x32xf32>
    tpu.vector_store %arg11[%c0_55, %c0_56], %44 {strides = array<i32>} : memref<128x32xf32, #tpu.memory_space<vmem>>, vector<128x32xf32>,
    %c2_57 = arith.constant 2 : index
    %c0_58 = arith.constant 0 : index
    %c0_59 = arith.constant 0 : index
    %46 = vector.load %arg10[%c2_57, %c0_58, %c0_59] : memref<10x18x4xf32, #tpu.memory_space<vmem>>, vector<8x16x4xf32>
    %c2_60 = arith.constant 2 : index
    %c1_61 = arith.constant 1 : index
    %c0_62 = arith.constant 0 : index
    %47 = vector.load %arg10[%c2_60, %c1_61, %c0_62] : memref<10x18x4xf32, #tpu.memory_space<vmem>>, vector<8x16x4xf32>
    %c2_63 = arith.constant 2 : index
    %c2_64 = arith.constant 2 : index
    %c0_65 = arith.constant 0 : index
    %48 = vector.load %arg10[%c2_63, %c2_64, %c0_65] : memref<10x18x4xf32, #tpu.memory_space<vmem>>, vector<8x16x4xf32>
    %49 = tpu.concatenate %46, %47, %48 in 2 : vector<8x16x4xf32>, vector<8x16x4xf32>, vector<8x16x4xf32> -> vector<8x16x12xf32>
    %50 = vector.shape_cast %49 : vector<8x16x12xf32> to vector<128x12xf32>
    %c2_66 = arith.constant 2 : index
    %c0_67 = arith.constant 0 : index
    %c0_68 = arith.constant 0 : index
    %51 = vector.load %arg7[%c2_66, %c0_67, %c0_68] : memref<3x12x32xf32, #tpu.memory_space<vmem>>, vector<1x12x32xf32>
    %52 = vector.shape_cast %51 : vector<1x12x32xf32> to vector<12x32xf32>
    %cst_69 = arith.constant dense<0.000000e+00> : vector<128x32xf32>
    %53 = tpu.matmul %50, %52, %cst_69 {dimension_numbers = #tpu.dot_dimension_numbers<[1], [0], [0], [1], [0, 0, 1, 1], [], []>} : vector<128x12xf32>, vector<12x32xf32>, vector<128x32xf32> -> vector<128x32xf32>
    %c0_70 = arith.constant 0 : index
    %c0_71 = arith.constant 0 : index
    %54 = vector.load %arg11[%c0_70, %c0_71] : memref<128x32xf32, #tpu.memory_space<vmem>>, vector<128x32xf32>
    %55 = arith.addf %54, %53 : vector<128x32xf32>
    %c0_72 = arith.constant 0 : index
    %c0_73 = arith.constant 0 : index
    %56 = vector.load %arg11[%c0_72, %c0_73] : memref<128x32xf32, #tpu.memory_space<vmem>>, vector<128x32xf32>
    tpu.vector_store %arg11[%c0_72, %c0_73], %55 {strides = array<i32>} : memref<128x32xf32, #tpu.memory_space<vmem>>, vector<128x32xf32>,
    %c0_74 = arith.constant 0 : index
    %c0_75 = arith.constant 0 : index
    %57 = vector.load %arg11[%c0_74, %c0_75] : memref<128x32xf32, #tpu.memory_space<vmem>>, vector<128x32xf32>
    %c0_76 = arith.constant 0 : index
    %c0_77 = arith.constant 0 : index
    %58 = vector.load %arg8[%c0_76, %c0_77] : memref<1x32xf32, #tpu.memory_space<vmem>>, vector<1x32xf32>
    %59 = vector.broadcast %58 : vector<1x32xf32> to vector<128x32xf32>
    %60 = arith.addf %57, %59 : vector<128x32xf32>
    %61 = vector.shape_cast %60 : vector<128x32xf32> to vector<8x16x32xf32>
    %c0_78 = arith.constant 0 : index
    %c0_79 = arith.constant 0 : index
    %c0_80 = arith.constant 0 : index
    %c0_81 = arith.constant 0 : index
    %62 = vector.load %arg9[%c0_78, %c0_79, %c0_80, %c0_81] : memref<1x8x16x32xf32, #tpu.memory_space<vmem>>, vector<1x8x16x32xf32>
    %63 = vector.shape_cast %62 : vector<1x8x16x32xf32> to vector<8x16x32xf32>
    %64 = vector.shape_cast %61 : vector<8x16x32xf32> to vector<1x8x16x32xf32>
    tpu.vector_store %arg9[%c0_78, %c0_79, %c0_80, %c0_81], %64 {strides = array<i32>} : memref<1x8x16x32xf32, #tpu.memory_space<vmem>>, vector<1x8x16x32xf32>,
    return
  }
  func.func @transform_0(%arg0: i32, %arg1: i32) -> (i32, i32, i32, i32) {
    %c0_i32 = arith.constant 0 : i32
    %c0_i32_0 = arith.constant 0 : i32
    %c0_i32_1 = arith.constant 0 : i32
    return %arg0, %arg1, %c0_i32, %c0_i32_0 : i32, i32, i32, i32
  }
  func.func @transform_1(%arg0: i32, %arg1: i32) -> (i32, i32, i32, i32) {
    %c8_i32 = arith.constant 8 : i32
    %0 = arith.muli %arg1, %c8_i32 : i32
    %c1_i32 = arith.constant 1 : i32
    %1 = arith.subi %0, %c1_i32 : i32
    %c0_i32 = arith.constant 0 : i32
    %2 = arith.maxsi %1, %c0_i32 : i32
    %c0_i32_0 = arith.constant 0 : i32
    %c0_i32_1 = arith.constant 0 : i32
    %c0_i32_2 = arith.constant 0 : i32
    return %arg0, %2, %c0_i32_0, %c0_i32_1 : i32, i32, i32, i32
  }
  func.func @transform_2(%arg0: i32, %arg1: i32) -> (i32, i32, i32, i32) {
    %c1_i32 = arith.constant 1 : i32
    %0 = arith.addi %arg1, %c1_i32 : i32
    %c8_i32 = arith.constant 8 : i32
    %1 = arith.muli %0, %c8_i32 : i32
    %c15_i32 = arith.constant 15 : i32
    %2 = arith.minsi %1, %c15_i32 : i32
    %c0_i32 = arith.constant 0 : i32
    %c0_i32_0 = arith.constant 0 : i32
    %c0_i32_1 = arith.constant 0 : i32
    return %arg0, %2, %c0_i32, %c0_i32_0 : i32, i32, i32, i32
  }
  func.func @transform_3(%arg0: i32, %arg1: i32) -> (i32, i32) {
    %c0_i32 = arith.constant 0 : i32
    %c0_i32_0 = arith.constant 0 : i32
    %c0_i32_1 = arith.constant 0 : i32
    return %c0_i32, %c0_i32_0 : i32, i32
  }
  func.func @transform_4(%arg0: i32, %arg1: i32) -> (i32, i32) {
    %c0_i32 = arith.constant 0 : i32
    %c0_i32_0 = arith.constant 0 : i32
    %c0_i32_1 = arith.constant 0 : i32
    return %c0_i32, %c0_i32_0 : i32, i32
  }
  func.func @transform_5(%arg0: i32, %arg1: i32) -> (i32, i32, i32) {
    %c0_i32 = arith.constant 0 : i32
    %c0_i32_0 = arith.constant 0 : i32
    %c0_i32_1 = arith.constant 0 : i32
    %c0_i32_2 = arith.constant 0 : i32
    return %c0_i32, %c0_i32_0, %c0_i32_1 : i32, i32, i32
  }
  func.func @transform_6(%arg0: i32, %arg1: i32) -> (i32, i32) {
    %c0_i32 = arith.constant 0 : i32
    %c0_i32_0 = arith.constant 0 : i32
    %c0_i32_1 = arith.constant 0 : i32
    return %c0_i32, %c0_i32_0 : i32, i32
  }
  func.func @transform_7(%arg0: i32, %arg1: i32) -> (i32, i32, i32, i32) {
    %c0_i32 = arith.constant 0 : i32
    %c0_i32_0 = arith.constant 0 : i32
    %c0_i32_1 = arith.constant 0 : i32
    return %arg0, %arg1, %c0_i32, %c0_i32_0 : i32, i32, i32, i32
  }
}

</mosaic_0001>

<llo_original>
// kernel: one_three_conv_forward.1
$region0: #{one_three_conv_forward.1}
  #allocation0 [shape = 'u32[]', space=smem, size = 0x4, offset = 0x4, fixed_abs, tag = 'smem constant byte address 0x4 - core index']
  #allocation1 [shape = 'u32[144,128]{1,0:T(1,128)}', space=vmem, size = 0x12000, scoped, tag = 'internal scratch']
  #allocation2 [shape = 'f32[10,18,4]{2,1,0:T(8,128)}', space=vmem, size = 0x1e000, scoped, tag = 'scratch operand']
  #allocation3 [shape = 'f32[128,32]{1,0:T(8,128)}', space=vmem, size = 0x10000, scoped, tag = 'scratch operand']
  %s0 = inlined_call_operand.vmem [shape: f32[2,16,16,16], index: 0, kind: input, shape index: {}, may-alias: {0,1,2}]
  %s1 = inlined_call_operand.vmem [shape: f32[2,16,16,16], index: 1, kind: input, shape index: {}, may-alias: {0,1,2}]
  %s2 = inlined_call_operand.vmem [shape: f32[2,16,16,16], index: 2, kind: input, shape index: {}, may-alias: {0,1,2}]
  %s3 = inlined_call_operand.vmem [shape: f32[16,4], index: 3, kind: input, shape index: {}]
  %s4 = inlined_call_operand.vmem [shape: f32[1,4], index: 4, kind: input, shape index: {}]
  %s5 = inlined_call_operand.vmem [shape: f32[3,12,32], index: 5, kind: input, shape index: {}]
  %s6 = inlined_call_operand.vmem [shape: f32[1,32], index: 6, kind: input, shape index: {}]
  %s7 = inlined_call_operand.hbm [shape: f32[2,16,16,32], index: 7, kind: output, shape index: {}]
  %s8 = sld [smem:[#allocation0]]
  $region69: #{one_three_conv_forward.1} parent=0
    _
  %s10 = ssub.s32 1, %s8
  %s11 = scalar_select 0, %s10, %s8
  $region1: #{one_three_conv_forward.1} parent=0
    #allocation4 [shape = 'u8[131072]{0}', space=vmem, size = 0x20000, scoped, tag = 'output window, operand 0']
    #allocation5 [shape = 's32[2]{0}', space=sflag, size = 0x8, scoped, tag = 'scoped memory for one_three_conv_forward.1']
    %12 = vsyncpa [#allocation5], 0
    %s13 = scalar_lea.sflag [#allocation5], 1
    %14 = vsyncpa %s13, 0
    loop: start=0, step=1, limit=6
    $region2: #{one_three_conv_forward.1} parent=1 // loop_pre_header
      _
    $region3: #{one_three_conv_forward.1} parent=1 // loop_header
      %s16 = sphi 0, %s20
      %p17 = scmp.ge.s32.totalorder %s16, 6
      %s23 = sphi 0, %s35
      %s24 = sphi 0, %s31
      %s25 = sphi 0, %s23
      %s26 = sphi 0, %s24
      %s27 = sphi 0, %s25
      %s28 = sphi 0, %s26
      %s40 = sphi 0, %s42
      %s43 = sphi 0, %s40
      %s44 = sphi 0, %s43
      %s60 = sphi 0, %s44
      %s76 = sphi 0, %s78
      %s79 = sphi 0, %s76
      %s80 = sphi 0, %s79
      %s96 = sphi 0, %s80
      %s112 = sphi 0, %s114
      %s115 = sphi 0, %s112
      %s116 = sphi 0, %s115
      %s132 = sphi 0, %s116
      %s136 = sphi 0, %s136
      %s138 = sphi 0, %s136
      %s139 = sphi 0, %s138
      %s153 = sphi 0, %s139
      %s157 = sphi 0, %s157
      %s159 = sphi 0, %s157
      %s160 = sphi 0, %s159
      %s174 = sphi 0, %s160
      %s178 = sphi 0, %s178
      %s180 = sphi 0, %s178
      %s181 = sphi 0, %s180
      %s195 = sphi 0, %s181
      %s199 = sphi 0, %s199
      %s201 = sphi 0, %s199
      %s202 = sphi 0, %s201
      %s216 = sphi 0, %s202
      %s224 = sphi 0, %s226
      %s227 = sphi 0, %s224
      %s228 = sphi 0, %s227
      %s244 = sphi 0, %s228
    $region4: #{one_three_conv_forward.1} parent=1 // loop_header_branch
      %19 = sbr.rel (%p17) target = $region8
    $region5: #{one_three_conv_forward.1} parent=1 // loop_body
      %s21 = ssub.s32 %s16, 1
      %s22 = ssub.s32 %s16, 2
      %s29 = sadd.s32 1, %s24
      %p30 = scmp.ge.s32.totalorder %s29, 2
      %s31 = scalar_select %p30, 0, %s29
      %s32 = sadd.s32 1, %s23
      %s33 = scalar_select %p30, %s32, %s23
      %p34 = scmp.ge.s32.totalorder %s33, 2
      %s35 = scalar_select %p34, 0, %s33
      %s36 = ssub.s32 %s23, %s35
      %s37 = ssub.s32 %s24, %s31
      %s38 = sor.u32 %s36, %s37
      %p39 = scmp.eq.s32.totalorder %s38, 0
      %s41 = sadd.s32 %s40, 1
      %s42 = scalar_select %p39, %s40, %s41
      %p45 = pneg %p39
      %p46 = scmp.eq.s32.totalorder %s16, 3
      %p47 = por %p45, %p46
      %p48 = scmp.ne.s32.totalorder %s40, %s43
      %p49 = scmp.eq.s32.totalorder %s16, 0
      %p50 = por %p48, %p49
      %p51 = scmp.ne.s32.totalorder %s40, %s43
      %p52 = scmp.eq.s32.totalorder %s21, 3
      %p53 = por %p51, %p52
      %p54 = scmp.ne.s32.totalorder %s43, %s44
      %p55 = scmp.eq.s32.totalorder %s21, 0
      %p56 = por %p54, %p55
      %p57 = scmp.ne.s32.totalorder %s43, %s44
      %p58 = scmp.eq.s32.totalorder %s22, 3
      %p59 = por %p57, %p58
      %p61 = scmp.ne.s32.totalorder %s44, %s60
      %p62 = scmp.eq.s32.totalorder %s22, 0
      %p63 = por %p61, %p62
      %s64 = smul.u32 %s24, 8
      %s65 = ssub.s32 %s64, 1
      %p66 = scmp.gt.s32.totalorder %s65, 0
      %s67 = scalar_select %p66, %s65, 0
      %s68 = smul.u32 %s31, 8
      %s69 = ssub.s32 %s68, 1
      %p70 = scmp.gt.s32.totalorder %s69, 0
      %s71 = scalar_select %p70, %s69, 0
      %s72 = ssub.s32 %s23, %s35
      %s73 = ssub.s32 %s67, %s71
      %s74 = sor.u32 %s72, %s73
      %p75 = scmp.eq.s32.totalorder %s74, 0
      %s77 = sadd.s32 %s76, 1
      %s78 = scalar_select %p75, %s76, %s77
      %p81 = pneg %p75
      %p82 = scmp.eq.s32.totalorder %s16, 3
      %p83 = por %p81, %p82
      %p84 = scmp.ne.s32.totalorder %s76, %s79
      %p85 = scmp.eq.s32.totalorder %s16, 0
      %p86 = por %p84, %p85
      %p87 = scmp.ne.s32.totalorder %s76, %s79
      %p88 = scmp.eq.s32.totalorder %s21, 3
      %p89 = por %p87, %p88
      %p90 = scmp.ne.s32.totalorder %s79, %s80
      %p91 = scmp.eq.s32.totalorder %s21, 0
      %p92 = por %p90, %p91
      %p93 = scmp.ne.s32.totalorder %s79, %s80
      %p94 = scmp.eq.s32.totalorder %s22, 3
      %p95 = por %p93, %p94
      %p97 = scmp.ne.s32.totalorder %s80, %s96
      %p98 = scmp.eq.s32.totalorder %s22, 0
      %p99 = por %p97, %p98
      %s100 = sadd.s32 %s24, 1
      %s101 = smul.u32 %s100, 8
      %p102 = scmp.lt.s32.totalorder %s101, 15
      %s103 = scalar_select %p102, %s101, 15
      %s104 = sadd.s32 %s31, 1
      %s105 = smul.u32 %s104, 8
      %p106 = scmp.lt.s32.totalorder %s105, 15
      %s107 = scalar_select %p106, %s105, 15
      %s108 = ssub.s32 %s23, %s35
      %s109 = ssub.s32 %s103, %s107
      %s110 = sor.u32 %s108, %s109
      %p111 = scmp.eq.s32.totalorder %s110, 0
      %s113 = sadd.s32 %s112, 1
      %s114 = scalar_select %p111, %s112, %s113
      %p117 = pneg %p111
      %p118 = scmp.eq.s32.totalorder %s16, 3
      %p119 = por %p117, %p118
      %p120 = scmp.ne.s32.totalorder %s112, %s115
      %p121 = scmp.eq.s32.totalorder %s16, 0
      %p122 = por %p120, %p121
      %p123 = scmp.ne.s32.totalorder %s112, %s115
      %p124 = scmp.eq.s32.totalorder %s21, 3
      %p125 = por %p123, %p124
      %p126 = scmp.ne.s32.totalorder %s115, %s116
      %p127 = scmp.eq.s32.totalorder %s21, 0
      %p128 = por %p126, %p127
      %p129 = scmp.ne.s32.totalorder %s115, %s116
      %p130 = scmp.eq.s32.totalorder %s22, 3
      %p131 = por %p129, %p130
      %p133 = scmp.ne.s32.totalorder %s116, %s132
      %p134 = scmp.eq.s32.totalorder %s22, 0
      %p135 = por %p133, %p134
      %s137 = sadd.s32 %s136, 1
      %p140 = scmp.eq.s32.totalorder %s16, 3
      %p141 = scmp.ne.s32.totalorder %s136, %s138
      %p142 = scmp.eq.s32.totalorder %s16, 0
      %p143 = por %p141, %p142
      %p144 = scmp.ne.s32.totalorder %s136, %s138
      %p145 = scmp.eq.s32.totalorder %s21, 3
      %p146 = por %p144, %p145
      %p147 = scmp.ne.s32.totalorder %s138, %s139
      %p148 = scmp.eq.s32.totalorder %s21, 0
      %p149 = por %p147, %p148
      %p150 = scmp.ne.s32.totalorder %s138, %s139
      %p151 = scmp.eq.s32.totalorder %s22, 3
      %p152 = por %p150, %p151
      %p154 = scmp.ne.s32.totalorder %s139, %s153
      %p155 = scmp.eq.s32.totalorder %s22, 0
      %p156 = por %p154, %p155
      %s158 = sadd.s32 %s157, 1
      %p161 = scmp.eq.s32.totalorder %s16, 3
      %p162 = scmp.ne.s32.totalorder %s157, %s159
      %p163 = scmp.eq.s32.totalorder %s16, 0
      %p164 = por %p162, %p163
      %p165 = scmp.ne.s32.totalorder %s157, %s159
      %p166 = scmp.eq.s32.totalorder %s21, 3
      %p167 = por %p165, %p166
      %p168 = scmp.ne.s32.totalorder %s159, %s160
      %p169 = scmp.eq.s32.totalorder %s21, 0
      %p170 = por %p168, %p169
      %p171 = scmp.ne.s32.totalorder %s159, %s160
      %p172 = scmp.eq.s32.totalorder %s22, 3
      %p173 = por %p171, %p172
      %p175 = scmp.ne.s32.totalorder %s160, %s174
      %p176 = scmp.eq.s32.totalorder %s22, 0
      %p177 = por %p175, %p176
      %s179 = sadd.s32 %s178, 1
      %p182 = scmp.eq.s32.totalorder %s16, 3
      %p183 = scmp.ne.s32.totalorder %s178, %s180
      %p184 = scmp.eq.s32.totalorder %s16, 0
      %p185 = por %p183, %p184
      %p186 = scmp.ne.s32.totalorder %s178, %s180
      %p187 = scmp.eq.s32.totalorder %s21, 3
      %p188 = por %p186, %p187
      %p189 = scmp.ne.s32.totalorder %s180, %s181
      %p190 = scmp.eq.s32.totalorder %s21, 0
      %p191 = por %p189, %p190
      %p192 = scmp.ne.s32.totalorder %s180, %s181
      %p193 = scmp.eq.s32.totalorder %s22, 3
      %p194 = por %p192, %p193
      %p196 = scmp.ne.s32.totalorder %s181, %s195
      %p197 = scmp.eq.s32.totalorder %s22, 0
      %p198 = por %p196, %p197
      %s200 = sadd.s32 %s199, 1
      %p203 = scmp.eq.s32.totalorder %s16, 3
      %p204 = scmp.ne.s32.totalorder %s199, %s201
      %p205 = scmp.eq.s32.totalorder %s16, 0
      %p206 = por %p204, %p205
      %p207 = scmp.ne.s32.totalorder %s199, %s201
      %p208 = scmp.eq.s32.totalorder %s21, 3
      %p209 = por %p207, %p208
      %p210 = scmp.ne.s32.totalorder %s201, %s202
      %p211 = scmp.eq.s32.totalorder %s21, 0
      %p212 = por %p210, %p211
      %p213 = scmp.ne.s32.totalorder %s201, %s202
      %p214 = scmp.eq.s32.totalorder %s22, 3
      %p215 = por %p213, %p214
      %p217 = scmp.ne.s32.totalorder %s202, %s216
      %p218 = scmp.eq.s32.totalorder %s22, 0
      %p219 = por %p217, %p218
      %s220 = ssub.s32 %s23, %s35
      %s221 = ssub.s32 %s24, %s31
      %s222 = sor.u32 %s220, %s221
      %p223 = scmp.eq.s32.totalorder %s222, 0
      %s225 = sadd.s32 %s224, 1
      %s226 = scalar_select %p223, %s224, %s225
      %p229 = pneg %p223
      %p230 = scmp.eq.s32.totalorder %s16, 3
      %p231 = por %p229, %p230
      %p232 = scmp.ne.s32.totalorder %s224, %s227
      %p233 = scmp.eq.s32.totalorder %s16, 0
      %p234 = por %p232, %p233
      %p235 = scmp.ne.s32.totalorder %s224, %s227
      %p236 = scmp.eq.s32.totalorder %s21, 3
      %p237 = por %p235, %p236
      %p238 = scmp.ne.s32.totalorder %s227, %s228
      %p239 = scmp.eq.s32.totalorder %s21, 0
      %p240 = por %p238, %p239
      %p241 = scmp.ne.s32.totalorder %s227, %s228
      %p242 = scmp.eq.s32.totalorder %s22, 3
      %p243 = por %p241, %p242
      %p245 = scmp.ne.s32.totalorder %s228, %s244
      %p246 = scmp.eq.s32.totalorder %s22, 0
      %p247 = por %p245, %p246
      %p248 = scmp.le.s32.totalorder 1, %s16
      %p249 = scmp.lt.s32.totalorder %s16, 5
      %p250 = pnand %p248, %p249
      %p251 = pneg %p250
      // Predicated region
      $region9: #{one_three_conv_forward.1} parent=5 // pred_check
        _
      $region10: #{one_three_conv_forward.1} parent=5 // pred_check_branch
        %253 = sbr.rel (%p250) target = $region12
      $region11: #{one_three_conv_forward.1} parent=5 // pred_region
        %s254 = ssub.s32 %s16, 1
        // Predicated region
        $region13: #{one_three_conv_forward.1} parent=11 // pred_check
          %p255 = pneg %p149
        $region14: #{one_three_conv_forward.1} parent=11 // pred_check_branch
          %257 = sbr.rel (%p255) target = $region16
        $region15: #{one_three_conv_forward.1} parent=11 // pred_region
          _
        $region16: #{one_three_conv_forward.1} parent=11 // pred_fallthru
          _
        // Predicated region
        $region17: #{one_three_conv_forward.1} parent=11 // pred_check
          %p258 = pneg %p170
        $region18: #{one_three_conv_forward.1} parent=11 // pred_check_branch
          %260 = sbr.rel (%p258) target = $region20
        $region19: #{one_three_conv_forward.1} parent=11 // pred_region
          _
        $region20: #{one_three_conv_forward.1} parent=11 // pred_fallthru
          _
        // Predicated region
        $region21: #{one_three_conv_forward.1} parent=11 // pred_check
          %p261 = pneg %p191
        $region22: #{one_three_conv_forward.1} parent=11 // pred_check_branch
          %263 = sbr.rel (%p261) target = $region24
        $region23: #{one_three_conv_forward.1} parent=11 // pred_region
          _
        $region24: #{one_three_conv_forward.1} parent=11 // pred_fallthru
          _
        // Predicated region
        $region25: #{one_three_conv_forward.1} parent=11 // pred_check
          %p264 = pneg %p212
        $region26: #{one_three_conv_forward.1} parent=11 // pred_check_branch
          %266 = sbr.rel (%p264) target = $region28
        $region27: #{one_three_conv_forward.1} parent=11 // pred_region
          _
        $region28: #{one_three_conv_forward.1} parent=11 // pred_fallthru
          _
      $region12: #{one_three_conv_forward.1} parent=5 // pred_fallthru
        _
      %p267 = scmp.lt.s32.totalorder %s16, 4
      // Predicated region
      $region29: #{one_three_conv_forward.1} parent=5 // pred_check
        %p268 = pneg %p267
      $region30: #{one_three_conv_forward.1} parent=5 // pred_check_branch
        %270 = sbr.rel (%p268) target = $region32
      $region31: #{one_three_conv_forward.1} parent=5 // pred_region
        // Predicated region
        $region33: #{one_three_conv_forward.1} parent=31 // pred_check
          %p271 = pneg %p50
        $region34: #{one_three_conv_forward.1} parent=31 // pred_check_branch
          %273 = sbr.rel (%p271) target = $region36
        $region35: #{one_three_conv_forward.1} parent=31 // pred_region
          %s274 = smul.u32 8, %s24
          %p275 = scmp.lt.s32.totalorder %s23, 1
          %s276 = scalar_select %p275, %s23, 1
          %p277 = scmp.lt.s32.totalorder %s274, 15
          %s278 = scalar_select %p277, %s274, 15
          %s279 = smul.addr %s278, 2
          %s280 = smul.addr %s276, 32
          %s281 = sadd.s32 %s279, %s280
          %s282 = smul.addr %s281, 8
          %s283 = scalar_lea.vmem %s0, %s282
          %s284 = smul.u32 8, %s24
        $region36: #{one_three_conv_forward.1} parent=31 // pred_fallthru
          _
        // Predicated region
        $region37: #{one_three_conv_forward.1} parent=31 // pred_check
          %p285 = pneg %p86
        $region38: #{one_three_conv_forward.1} parent=31 // pred_check_branch
          %287 = sbr.rel (%p285) target = $region40
        $region39: #{one_three_conv_forward.1} parent=31 // pred_region
          %s288 = smul.u32 %s24, 8
          %s289 = ssub.s32 %s288, 1
          %p290 = scmp.gt.s32.totalorder %s289, 0
          %s291 = scalar_select %p290, %s289, 0
          %p292 = scmp.lt.s32.totalorder %s23, 1
          %s293 = scalar_select %p292, %s23, 1
          %p294 = scmp.lt.s32.totalorder %s291, 15
          %s295 = scalar_select %p294, %s291, 15
          %s296 = smul.addr %s295, 2
          %s297 = smul.addr %s293, 32
          %s298 = sadd.s32 %s296, %s297
          %s299 = smul.addr %s298, 8
          %s300 = scalar_lea.vmem %s1, %s299
          %s301 = smul.u32 %s24, 8
          %s302 = ssub.s32 %s301, 1
          %p303 = scmp.gt.s32.totalorder %s302, 0
          %s304 = scalar_select %p303, %s302, 0
        $region40: #{one_three_conv_forward.1} parent=31 // pred_fallthru
          _
        // Predicated region
        $region41: #{one_three_conv_forward.1} parent=31 // pred_check
          %p305 = pneg %p122
        $region42: #{one_three_conv_forward.1} parent=31 // pred_check_branch
          %307 = sbr.rel (%p305) target = $region44
        $region43: #{one_three_conv_forward.1} parent=31 // pred_region
          %s308 = sadd.s32 %s24, 1
          %s309 = smul.u32 %s308, 8
          %p310 = scmp.lt.s32.totalorder %s309, 15
          %s311 = scalar_select %p310, %s309, 15
          %p312 = scmp.lt.s32.totalorder %s23, 1
          %s313 = scalar_select %p312, %s23, 1
          %p314 = scmp.lt.s32.totalorder %s311, 15
          %s315 = scalar_select %p314, %s311, 15
          %s316 = smul.addr %s315, 2
          %s317 = smul.addr %s313, 32
          %s318 = sadd.s32 %s316, %s317
          %s319 = smul.addr %s318, 8
          %s320 = scalar_lea.vmem %s2, %s319
          %s321 = sadd.s32 %s24, 1
          %s322 = smul.u32 %s321, 8
          %p323 = scmp.lt.s32.totalorder %s322, 15
          %s324 = scalar_select %p323, %s322, 15
        $region44: #{one_three_conv_forward.1} parent=31 // pred_fallthru
          _
      $region32: #{one_three_conv_forward.1} parent=5 // pred_fallthru
        _
      %p325 = scmp.le.s32.totalorder 1, %s16
      %p326 = scmp.lt.s32.totalorder %s16, 5
      %p327 = pnand %p325, %p326
      %p328 = pneg %p327
      // Predicated region
      $region45: #{one_three_conv_forward.1} parent=5 // pred_check
        _
      $region46: #{one_three_conv_forward.1} parent=5 // pred_check_branch
        %330 = sbr.rel (%p327) target = $region48
      $region47: #{one_three_conv_forward.1} parent=5 // pred_region
        %s331 = ssub.s32 %s16, 1
        %s332 = smul.u32 8, %s26
        %p333 = scmp.lt.s32.totalorder %s25, 1
        %s334 = scalar_select %p333, %s25, 1
        %p335 = scmp.lt.s32.totalorder %s332, 15
        %s336 = scalar_select %p335, %s332, 15
        %s337 = smul.addr %s336, 2
        %s338 = smul.addr %s334, 32
        %s339 = sadd.s32 %s337, %s338
        %s340 = smul.addr %s339, 8
        %s341 = scalar_lea.vmem %s0, %s340
        %p342 = pneg %p56
        %p343 = pneg %p53
        %s344 = smul.u32 %s26, 8
        %s345 = ssub.s32 %s344, 1
        %p346 = scmp.gt.s32.totalorder %s345, 0
        %s347 = scalar_select %p346, %s345, 0
        %p348 = scmp.lt.s32.totalorder %s25, 1
        %s349 = scalar_select %p348, %s25, 1
        %p350 = scmp.lt.s32.totalorder %s347, 15
        %s351 = scalar_select %p350, %s347, 15
        %s352 = smul.addr %s351, 2
        %s353 = smul.addr %s349, 32
        %s354 = sadd.s32 %s352, %s353
        %s355 = smul.addr %s354, 8
        %s356 = scalar_lea.vmem %s1, %s355
        %p357 = pneg %p92
        %p358 = pneg %p89
        %s359 = sadd.s32 %s26, 1
        %s360 = smul.u32 %s359, 8
        %p361 = scmp.lt.s32.totalorder %s360, 15
        %s362 = scalar_select %p361, %s360, 15
        %p363 = scmp.lt.s32.totalorder %s25, 1
        %s364 = scalar_select %p363, %s25, 1
        %p365 = scmp.lt.s32.totalorder %s362, 15
        %s366 = scalar_select %p365, %s362, 15
        %s367 = smul.addr %s366, 2
        %s368 = smul.addr %s364, 32
        %s369 = sadd.s32 %s367, %s368
        %s370 = smul.addr %s369, 8
        %s371 = scalar_lea.vmem %s2, %s370
        %p372 = pneg %p128
        %p373 = pneg %p125
        %p374 = pneg %p149
        %p375 = pneg %p146
        %p376 = pneg %p170
        %p377 = pneg %p167
        %p378 = pneg %p191
        %p379 = pneg %p188
        %p380 = pneg %p212
        %p381 = pneg %p209
        %p382 = pneg %p240
        %p383 = pneg %p237
        %s384 = sand.u32 %s227, 1
        %s385 = scalar_lea.sflag [#allocation5], %s384
        %s386 = sand.u32 %s227, 1
        %s387 = smul.addr %s386, 128
        %s388 = scalar_lea.vmem [#allocation4], %s387
        %s389 = smul.u32 8, %s26
        %p390 = scmp.lt.s32.totalorder %s25, 1
        %s391 = scalar_select %p390, %s25, 1
        %p392 = scmp.lt.s32.totalorder %s389, 15
        %s393 = scalar_select %p392, %s389, 15
        %s394 = smul.addr %s393, 2
        %s395 = smul.addr %s391, 32
        %s396 = sadd.s32 %s394, %s395
        %s397 = smul.addr %s396, 8
        %s398 = scalar_lea.vmem %s0, %s397
        %s399 = smul.u32 8, %s26
        %s400 = smul.u32 %s26, 8
        %s401 = ssub.s32 %s400, 1
        %p402 = scmp.gt.s32.totalorder %s401, 0
        %s403 = scalar_select %p402, %s401, 0
        %p404 = scmp.lt.s32.totalorder %s25, 1
        %s405 = scalar_select %p404, %s25, 1
        %p406 = scmp.lt.s32.totalorder %s403, 15
        %s407 = scalar_select %p406, %s403, 15
        %s408 = smul.addr %s407, 2
        %s409 = smul.addr %s405, 32
        %s410 = sadd.s32 %s408, %s409
        %s411 = smul.addr %s410, 8
        %s412 = scalar_lea.vmem %s1, %s411
        %s413 = smul.u32 %s26, 8
        %s414 = ssub.s32 %s413, 1
        %p415 = scmp.gt.s32.totalorder %s414, 0
        %s416 = scalar_select %p415, %s414, 0
        %s417 = sadd.s32 %s26, 1
        %s418 = smul.u32 %s417, 8
        %p419 = scmp.lt.s32.totalorder %s418, 15
        %s420 = scalar_select %p419, %s418, 15
        %p421 = scmp.lt.s32.totalorder %s25, 1
        %s422 = scalar_select %p421, %s25, 1
        %p423 = scmp.lt.s32.totalorder %s420, 15
        %s424 = scalar_select %p423, %s420, 15
        %s425 = smul.addr %s424, 2
        %s426 = smul.addr %s422, 32
        %s427 = sadd.s32 %s425, %s426
        %s428 = smul.addr %s427, 8
        %s429 = scalar_lea.vmem %s2, %s428
        %s430 = sadd.s32 %s26, 1
        %s431 = smul.u32 %s430, 8
        %p432 = scmp.lt.s32.totalorder %s431, 15
        %s433 = scalar_select %p432, %s431, 15
        %s434 = smul.u32 8, %s26
        %vm435 = vcmask 24576
        %436 = vst.msk [vmem:[#allocation2] sm:$0x1] %vm435, 0.0
        %437 = vst.msk [vmem:[#allocation2 + $0x18] sm:$0x1] %vm435, 0.0
        %438 = vst.msk [vmem:[#allocation2 + $0x30] sm:$0x1] %vm435, 0.0
        %439 = vst.msk [vmem:[#allocation2 + $0x48] sm:$0x1] %vm435, 0.0
        %440 = vst.msk [vmem:[#allocation2 + $0x60] sm:$0x1] %vm435, 0.0
        %441 = vst.msk [vmem:[#allocation2 + $0x78] sm:$0x1] %vm435, 0.0
        %442 = vst.msk [vmem:[#allocation2 + $0x90] sm:$0x1] %vm435, 0.0
        %443 = vst.msk [vmem:[#allocation2 + $0xa8] sm:$0x1] %vm435, 0.0
        %444 = vst.msk [vmem:[#allocation2 + $0xc0] sm:$0x1] %vm435, 0.0
        %445 = vst.msk [vmem:[#allocation2 + $0xd8] sm:$0x1] %vm435, 0.0
        %446 = vst.msk [vmem:[#allocation2 + $0x11] sm:$0x1] %vm435, 0.0
        %447 = vst.msk [vmem:[#allocation2 + $0x29] sm:$0x1] %vm435, 0.0
        %448 = vst.msk [vmem:[#allocation2 + $0x41] sm:$0x1] %vm435, 0.0
        %449 = vst.msk [vmem:[#allocation2 + $0x59] sm:$0x1] %vm435, 0.0
        %450 = vst.msk [vmem:[#allocation2 + $0x71] sm:$0x1] %vm435, 0.0
        %451 = vst.msk [vmem:[#allocation2 + $0x89] sm:$0x1] %vm435, 0.0
        %452 = vst.msk [vmem:[#allocation2 + $0xa1] sm:$0x1] %vm435, 0.0
        %453 = vst.msk [vmem:[#allocation2 + $0xb9] sm:$0x1] %vm435, 0.0
        %454 = vst.msk [vmem:[#allocation2 + $0xd1] sm:$0x1] %vm435, 0.0
        %455 = vst.msk [vmem:[#allocation2 + $0xe9] sm:$0x1] %vm435, 0.0
        %vm456 = vcmask 31744
        %457 = vst.msk [vmem:[#allocation2] sm:$0xff] %vm456, 0.0
        %458 = vst.msk [vmem:[#allocation2 + $0x8] sm:$0xff] %vm456, 0.0
        %vm459 = vcmask 25600
        %460 = vst.msk [vmem:[#allocation2 + $0x10] sm:$0x3] %vm459, 0.0
        %s461 = scalar_lea.vmem [#allocation2], 216
        %462 = vst.msk [vmem:[%s461] sm:$0xff] %vm456, 0.0
        %463 = vst.msk [vmem:[%s461 + $0x8] sm:$0xff] %vm456, 0.0
        %464 = vst.msk [vmem:[%s461 + $0x10] sm:$0x3] %vm459, 0.0
        %v465 = vld [vmem:[%s3] sm:$0xff]
        %v466 = vld [vmem:[%s3 + $0x8] sm:$0xff]
        %v467 = vld [vmem:[%s4] sm:$0x1]
        %v468 = vld [vmem:[%s398] sm:$0xff]
        %v469 = vld [vmem:[%s398 + $0x8] sm:$0xff]
        %v470 = vld [vmem:[%s398 + $0x10] sm:$0xff]
        %v471 = vld [vmem:[%s398 + $0x18] sm:$0xff]
        %v472 = vld [vmem:[%s398 + $0x20] sm:$0xff]
        %v473 = vld [vmem:[%s398 + $0x28] sm:$0xff]
        %v474 = vld [vmem:[%s398 + $0x30] sm:$0xff]
        %v475 = vld [vmem:[%s398 + $0x38] sm:$0xff]
        %v476 = vld [vmem:[%s398 + $0x40] sm:$0xff]
        %v477 = vld [vmem:[%s398 + $0x48] sm:$0xff]
        %v478 = vld [vmem:[%s398 + $0x50] sm:$0xff]
        %v479 = vld [vmem:[%s398 + $0x58] sm:$0xff]
        %v480 = vld [vmem:[%s398 + $0x60] sm:$0xff]
        %v481 = vld [vmem:[%s398 + $0x68] sm:$0xff]
        %v482 = vld [vmem:[%s398 + $0x70] sm:$0xff]
        %v483 = vld [vmem:[%s398 + $0x78] sm:$0xff]
        %v485 = vlaneseq
        %v486 = vshrl.u32 %v485, 7
        %v487 = vsub.s32 0, %v486
        %v488 = vrot.slane %v467, %v487
        %vm490 = vcmask 130048
        %v492 = vsel %vm490, %v468, 0
        %v495 = vsel %vm490, %v469, 0
        %v498 = vsel %vm490, %v470, 0
        %v501 = vsel %vm490, %v471, 0
        %v504 = vsel %vm490, %v472, 0
        %v507 = vsel %vm490, %v473, 0
        %v510 = vsel %vm490, %v474, 0
        %v513 = vsel %vm490, %v475, 0
        %v516 = vsel %vm490, %v476, 0
        %v519 = vsel %vm490, %v477, 0
        %v522 = vsel %vm490, %v478, 0
        %v525 = vsel %vm490, %v479, 0
        %v528 = vsel %vm490, %v480, 0
        %v531 = vsel %vm490, %v481, 0
        %v534 = vsel %vm490, %v482, 0
        %v537 = vsel %vm490, %v483, 0
        %539 = vmatprep.subr.mxu0 0.0
        %540 = vmatpush1.msra.mxu0 %v465
        %541 = vmatprep.subr.mxu0 0.0
        %542 = vmatpush1.msra.mxu0 %v466
        %543 = vmatprep.subr.mxu0 0.0
        %544 = vmatpush1.msra.mxu0 0.0
        %545 = vmatprep.subr.mxu0 0.0
        %546 = vmatpush1.msra.mxu0 0.0
        %547 = vmatprep.subr.mxu0 0.0
        %548 = vmatpush1.msra.mxu0 0.0
        %549 = vmatprep.subr.mxu0 0.0
        %550 = vmatpush1.msra.mxu0 0.0
        %551 = vmatprep.subr.mxu0 0.0
        %552 = vmatpush1.msra.mxu0 0.0
        %553 = vmatprep.subr.mxu0 0.0
        %554 = vmatpush1.msra.mxu0 0.0
        %555 = vmatprep.subr.mxu0 0.0
        %556 = vmatpush1.msra.mxu0 0.0
        %557 = vmatprep.subr.mxu0 0.0
        %558 = vmatpush1.msra.mxu0 0.0
        %559 = vmatprep.subr.mxu0 0.0
        %560 = vmatpush1.msra.mxu0 0.0
        %561 = vmatprep.subr.mxu0 0.0
        %562 = vmatpush1.msra.mxu0 0.0
        %563 = vmatprep.subr.mxu0 0.0
        %564 = vmatpush1.msra.mxu0 0.0
        %565 = vmatprep.subr.mxu0 0.0
        %566 = vmatpush1.msra.mxu0 0.0
        %567 = vmatprep.subr.mxu0 0.0
        %568 = vmatpush1.msra.mxu0 0.0
        %569 = vmatprep.subr.mxu0 0.0
        %570 = vmatpush1.msra.mxu0 0.0
        %571 = vmatprep.subr.mxu0 0.0
        %572 = vmatpush1.msra.mxu0 0.0
        %573 = vmatprep.subr.mxu0 0.0
        %574 = vmatpush1.msra.mxu0 0.0
        %575 = vmatprep.subr.mxu0 0.0
        %576 = vmatpush1.msra.mxu0 0.0
        %577 = vmatprep.subr.mxu0 0.0
        %578 = vmatpush1.msra.mxu0 0.0
        %579 = vmatprep.subr.mxu0 0.0
        %580 = vmatpush1.msra.mxu0 0.0
        %581 = vmatprep.subr.mxu0 0.0
        %582 = vmatpush1.msra.mxu0 0.0
        %583 = vmatprep.subr.mxu0 0.0
        %584 = vmatpush1.msra.mxu0 0.0
        %585 = vmatprep.subr.mxu0 0.0
        %586 = vmatpush1.msra.mxu0 0.0
        %587 = vmatprep.subr.mxu0 0.0
        %588 = vmatpush1.msra.mxu0 0.0
        %589 = vmatprep.subr.mxu0 0.0
        %590 = vmatpush1.msra.mxu0 0.0
        %591 = vmatprep.subr.mxu0 0.0
        %592 = vmatpush1.msra.mxu0 0.0
        %593 = vmatprep.subr.mxu0 0.0
        %594 = vmatpush1.msra.mxu0 0.0
        %595 = vmatprep.subr.mxu0 0.0
        %596 = vmatpush1.msra.mxu0 0.0
        %597 = vmatprep.subr.mxu0 0.0
        %598 = vmatpush1.msra.mxu0 0.0
        %599 = vmatprep.subr.mxu0 0.0
        %600 = vmatpush1.msra.mxu0 0.0
        %601 = vmatprep.subr.mxu0 0.0
        %602 = vmatpush1.msra.mxu0 0.0
        %603 = vmatprep.mubr.f32.mxu0 0.0
        %604 = vmatmul.mubr.f32.gmra.mrb[0].mxu0 %v492
        %v605 = vpop.f32.mrb[0].mxu0
        %v606 = vadd.f32 %v488, %v605
        %v607 = vpop.f32.mrb[0].mxu0
        %608 = vmatprep.mubr.f32.mxu0 0.0
        %609 = vmatmul.mubr.f32.gmra.mrb[0].mxu0 %v495
        %v610 = vpop.f32.mrb[0].mxu0
        %v611 = vadd.f32 %v488, %v610
        %v612 = vpop.f32.mrb[0].mxu0
        %613 = vmatprep.mubr.f32.mxu0 0.0
        %614 = vmatmul.mubr.f32.gmra.mrb[0].mxu0 %v498
        %v615 = vpop.f32.mrb[0].mxu0
        %v616 = vadd.f32 %v488, %v615
        %v617 = vpop.f32.mrb[0].mxu0
        %618 = vmatprep.mubr.f32.mxu0 0.0
        %619 = vmatmul.mubr.f32.gmra.mrb[0].mxu0 %v501
        %v620 = vpop.f32.mrb[0].mxu0
        %v621 = vadd.f32 %v488, %v620
        %v622 = vpop.f32.mrb[0].mxu0
        %623 = vmatprep.mubr.f32.mxu0 0.0
        %624 = vmatmul.mubr.f32.gmra.mrb[0].mxu0 %v504
        %v625 = vpop.f32.mrb[0].mxu0
        %v626 = vadd.f32 %v488, %v625
        %v627 = vpop.f32.mrb[0].mxu0
        %628 = vmatprep.mubr.f32.mxu0 0.0
        %629 = vmatmul.mubr.f32.gmra.mrb[0].mxu0 %v507
        %v630 = vpop.f32.mrb[0].mxu0
        %v631 = vadd.f32 %v488, %v630
        %v632 = vpop.f32.mrb[0].mxu0
        %633 = vmatprep.mubr.f32.mxu0 0.0
        %634 = vmatmul.mubr.f32.gmra.mrb[0].mxu0 %v510
        %v635 = vpop.f32.mrb[0].mxu0
        %v636 = vadd.f32 %v488, %v635
        %v637 = vpop.f32.mrb[0].mxu0
        %638 = vmatprep.mubr.f32.mxu0 0.0
        %639 = vmatmul.mubr.f32.gmra.mrb[0].mxu0 %v513
        %v640 = vpop.f32.mrb[0].mxu0
        %v641 = vadd.f32 %v488, %v640
        %v642 = vpop.f32.mrb[0].mxu0
        %643 = vmatprep.mubr.f32.mxu0 0.0
        %644 = vmatmul.mubr.f32.gmra.mrb[0].mxu0 %v516
        %v645 = vpop.f32.mrb[0].mxu0
        %v646 = vadd.f32 %v488, %v645
        %v647 = vpop.f32.mrb[0].mxu0
        %648 = vmatprep.mubr.f32.mxu0 0.0
        %649 = vmatmul.mubr.f32.gmra.mrb[0].mxu0 %v519
        %v650 = vpop.f32.mrb[0].mxu0
        %v651 = vadd.f32 %v488, %v650
        %v652 = vpop.f32.mrb[0].mxu0
        %653 = vmatprep.mubr.f32.mxu0 0.0
        %654 = vmatmul.mubr.f32.gmra.mrb[0].mxu0 %v522
        %v655 = vpop.f32.mrb[0].mxu0
        %v656 = vadd.f32 %v488, %v655
        %v657 = vpop.f32.mrb[0].mxu0
        %658 = vmatprep.mubr.f32.mxu0 0.0
        %659 = vmatmul.mubr.f32.gmra.mrb[0].mxu0 %v525
        %v660 = vpop.f32.mrb[0].mxu0
        %v661 = vadd.f32 %v488, %v660
        %v662 = vpop.f32.mrb[0].mxu0
        %663 = vmatprep.mubr.f32.mxu0 0.0
        %664 = vmatmul.mubr.f32.gmra.mrb[0].mxu0 %v528
        %v665 = vpop.f32.mrb[0].mxu0
        %v666 = vadd.f32 %v488, %v665
        %v667 = vpop.f32.mrb[0].mxu0
        %668 = vmatprep.mubr.f32.mxu0 0.0
        %669 = vmatmul.mubr.f32.gmra.mrb[0].mxu0 %v531
        %v670 = vpop.f32.mrb[0].mxu0
        %v671 = vadd.f32 %v488, %v670
        %v672 = vpop.f32.mrb[0].mxu0
        %673 = vmatprep.mubr.f32.mxu0 0.0
        %674 = vmatmul.mubr.f32.gmra.mrb[0].mxu0 %v534
        %v675 = vpop.f32.mrb[0].mxu0
        %v676 = vadd.f32 %v488, %v675
        %v677 = vpop.f32.mrb[0].mxu0
        %678 = vmatprep.mubr.f32.mxu0 0.0
        %679 = vmatmul.mubr.f32.gmra.mrb[0].mxu0 %v537
        %v680 = vpop.f32.mrb[0].mxu0
        %v681 = vadd.f32 %v488, %v680
        %v682 = vpop.f32.mrb[0].mxu0
        %683 = vdwg.mxu0
        %v684 = vmax.f32 %v606, 0.0
        %v685 = vmax.f32 %v611, 0.0
        %v686 = vmax.f32 %v616, 0.0
        %v687 = vmax.f32 %v621, 0.0
        %v688 = vmax.f32 %v626, 0.0
        %v689 = vmax.f32 %v631, 0.0
        %v690 = vmax.f32 %v636, 0.0
        %v691 = vmax.f32 %v641, 0.0
        %v692 = vmax.f32 %v646, 0.0
        %v693 = vmax.f32 %v651, 0.0
        %v694 = vmax.f32 %v656, 0.0
        %v695 = vmax.f32 %v661, 0.0
        %v696 = vmax.f32 %v666, 0.0
        %v697 = vmax.f32 %v671, 0.0
        %v698 = vmax.f32 %v676, 0.0
        %v699 = vmax.f32 %v681, 0.0
        %s700 = scalar_lea.vmem [#allocation2], 24
        %701 = vst.msk [vmem:[%s700 + $0x1] sm:$0xff] %vm456, %v684
        %702 = vst.msk [vmem:[%s700 + $0x9] sm:$0xff] %vm456, %v685
        %703 = vst.msk [vmem:[%s700 + $0x19] sm:$0xff] %vm456, %v686
        %704 = vst.msk [vmem:[%s700 + $0x21] sm:$0xff] %vm456, %v687
        %705 = vst.msk [vmem:[%s700 + $0x31] sm:$0xff] %vm456, %v688
        %706 = vst.msk [vmem:[%s700 + $0x39] sm:$0xff] %vm456, %v689
        %707 = vst.msk [vmem:[%s700 + $0x49] sm:$0xff] %vm456, %v690
        %708 = vst.msk [vmem:[%s700 + $0x51] sm:$0xff] %vm456, %v691
        %709 = vst.msk [vmem:[%s700 + $0x61] sm:$0xff] %vm456, %v692
        %710 = vst.msk [vmem:[%s700 + $0x69] sm:$0xff] %vm456, %v693
        %711 = vst.msk [vmem:[%s700 + $0x79] sm:$0xff] %vm456, %v694
        %712 = vst.msk [vmem:[%s700 + $0x81] sm:$0xff] %vm456, %v695
        %713 = vst.msk [vmem:[%s700 + $0x91] sm:$0xff] %vm456, %v696
        %714 = vst.msk [vmem:[%s700 + $0x99] sm:$0xff] %vm456, %v697
        %715 = vst.msk [vmem:[%s700 + $0xa9] sm:$0xff] %vm456, %v698
        %716 = vst.msk [vmem:[%s700 + $0xb1] sm:$0xff] %vm456, %v699
        %p717 = scmp.gt.s32.totalorder %s26, 0
        // Predicated region
        $region49: #{one_three_conv_forward.1} parent=47 // pred_check
          %p718 = pneg %p717
        $region50: #{one_three_conv_forward.1} parent=47 // pred_check_branch
          %720 = sbr.rel (%p718) target = $region52
        $region51: #{one_three_conv_forward.1} parent=47 // pred_region
          %v721 = vld [vmem:[%s412] sm:$0xff]
          %v722 = vld [vmem:[%s412 + $0x8] sm:$0xff]
          %v724 = vsel %vm490, %v721, 0
          %v727 = vsel %vm490, %v722, 0
          %729 = vmatprep.subr.mxu0 0.0
          %730 = vmatpush1.msra.mxu0 %v465
          %731 = vmatprep.subr.mxu0 0.0
          %732 = vmatpush1.msra.mxu0 %v466
          %733 = vmatprep.subr.mxu0 0.0
          %734 = vmatpush1.msra.mxu0 0.0
          %735 = vmatprep.subr.mxu0 0.0
          %736 = vmatpush1.msra.mxu0 0.0
          %737 = vmatprep.subr.mxu0 0.0
          %738 = vmatpush1.msra.mxu0 0.0
          %739 = vmatprep.subr.mxu0 0.0
          %740 = vmatpush1.msra.mxu0 0.0
          %741 = vmatprep.subr.mxu0 0.0
          %742 = vmatpush1.msra.mxu0 0.0
          %743 = vmatprep.subr.mxu0 0.0
          %744 = vmatpush1.msra.mxu0 0.0
          %745 = vmatprep.subr.mxu0 0.0
          %746 = vmatpush1.msra.mxu0 0.0
          %747 = vmatprep.subr.mxu0 0.0
          %748 = vmatpush1.msra.mxu0 0.0
          %749 = vmatprep.subr.mxu0 0.0
          %750 = vmatpush1.msra.mxu0 0.0
          %751 = vmatprep.subr.mxu0 0.0
          %752 = vmatpush1.msra.mxu0 0.0
          %753 = vmatprep.subr.mxu0 0.0
          %754 = vmatpush1.msra.mxu0 0.0
          %755 = vmatprep.subr.mxu0 0.0
          %756 = vmatpush1.msra.mxu0 0.0
          %757 = vmatprep.subr.mxu0 0.0
          %758 = vmatpush1.msra.mxu0 0.0
          %759 = vmatprep.subr.mxu0 0.0
          %760 = vmatpush1.msra.mxu0 0.0
          %761 = vmatprep.subr.mxu0 0.0
          %762 = vmatpush1.msra.mxu0 0.0
          %763 = vmatprep.subr.mxu0 0.0
          %764 = vmatpush1.msra.mxu0 0.0
          %765 = vmatprep.subr.mxu0 0.0
          %766 = vmatpush1.msra.mxu0 0.0
          %767 = vmatprep.subr.mxu0 0.0
          %768 = vmatpush1.msra.mxu0 0.0
          %769 = vmatprep.subr.mxu0 0.0
          %770 = vmatpush1.msra.mxu0 0.0
          %771 = vmatprep.subr.mxu0 0.0
          %772 = vmatpush1.msra.mxu0 0.0
          %773 = vmatprep.subr.mxu0 0.0
          %774 = vmatpush1.msra.mxu0 0.0
          %775 = vmatprep.subr.mxu0 0.0
          %776 = vmatpush1.msra.mxu0 0.0
          %777 = vmatprep.subr.mxu0 0.0
          %778 = vmatpush1.msra.mxu0 0.0
          %779 = vmatprep.subr.mxu0 0.0
          %780 = vmatpush1.msra.mxu0 0.0
          %781 = vmatprep.subr.mxu0 0.0
          %782 = vmatpush1.msra.mxu0 0.0
          %783 = vmatprep.subr.mxu0 0.0
          %784 = vmatpush1.msra.mxu0 0.0
          %785 = vmatprep.subr.mxu0 0.0
          %786 = vmatpush1.msra.mxu0 0.0
          %787 = vmatprep.subr.mxu0 0.0
          %788 = vmatpush1.msra.mxu0 0.0
          %789 = vmatprep.subr.mxu0 0.0
          %790 = vmatpush1.msra.mxu0 0.0
          %791 = vmatprep.subr.mxu0 0.0
          %792 = vmatpush1.msra.mxu0 0.0
          %793 = vmatprep.mubr.f32.mxu0 0.0
          %794 = vmatmul.mubr.f32.gmra.mrb[0].mxu0 %v724
          %v795 = vpop.f32.mrb[0].mxu0
          %v796 = vadd.f32 %v488, %v795
          %v797 = vpop.f32.mrb[0].mxu0
          %798 = vmatprep.mubr.f32.mxu0 0.0
          %799 = vmatmul.mubr.f32.gmra.mrb[0].mxu0 %v727
          %v800 = vpop.f32.mrb[0].mxu0
          %v801 = vadd.f32 %v488, %v800
          %v802 = vpop.f32.mrb[0].mxu0
          %803 = vdwg.mxu0
          %v804 = vmax.f32 %v796, 0.0
          %v805 = vmax.f32 %v801, 0.0
          %806 = vst.msk [vmem:[#allocation2 + $0x1] sm:$0xff] %vm456, %v804
          %807 = vst.msk [vmem:[#allocation2 + $0x9] sm:$0xff] %vm456, %v805
        $region52: #{one_three_conv_forward.1} parent=47 // pred_fallthru
          _
        %p808 = scmp.lt.s32.totalorder %s26, 1
        // Predicated region
        $region53: #{one_three_conv_forward.1} parent=47 // pred_check
          %p809 = pneg %p808
        $region54: #{one_three_conv_forward.1} parent=47 // pred_check_branch
          %811 = sbr.rel (%p809) target = $region56
        $region55: #{one_three_conv_forward.1} parent=47 // pred_region
          %v812 = vld [vmem:[%s429] sm:$0xff]
          %v813 = vld [vmem:[%s429 + $0x8] sm:$0xff]
          %v815 = vsel %vm490, %v812, 0
          %v818 = vsel %vm490, %v813, 0
          %820 = vmatprep.subr.mxu0 0.0
          %821 = vmatpush1.msra.mxu0 %v465
          %822 = vmatprep.subr.mxu0 0.0
          %823 = vmatpush1.msra.mxu0 %v466
          %824 = vmatprep.subr.mxu0 0.0
          %825 = vmatpush1.msra.mxu0 0.0
          %826 = vmatprep.subr.mxu0 0.0
          %827 = vmatpush1.msra.mxu0 0.0
          %828 = vmatprep.subr.mxu0 0.0
          %829 = vmatpush1.msra.mxu0 0.0
          %830 = vmatprep.subr.mxu0 0.0
          %831 = vmatpush1.msra.mxu0 0.0
          %832 = vmatprep.subr.mxu0 0.0
          %833 = vmatpush1.msra.mxu0 0.0
          %834 = vmatprep.subr.mxu0 0.0
          %835 = vmatpush1.msra.mxu0 0.0
          %836 = vmatprep.subr.mxu0 0.0
          %837 = vmatpush1.msra.mxu0 0.0
          %838 = vmatprep.subr.mxu0 0.0
          %839 = vmatpush1.msra.mxu0 0.0
          %840 = vmatprep.subr.mxu0 0.0
          %841 = vmatpush1.msra.mxu0 0.0
          %842 = vmatprep.subr.mxu0 0.0
          %843 = vmatpush1.msra.mxu0 0.0
          %844 = vmatprep.subr.mxu0 0.0
          %845 = vmatpush1.msra.mxu0 0.0
          %846 = vmatprep.subr.mxu0 0.0
          %847 = vmatpush1.msra.mxu0 0.0
          %848 = vmatprep.subr.mxu0 0.0
          %849 = vmatpush1.msra.mxu0 0.0
          %850 = vmatprep.subr.mxu0 0.0
          %851 = vmatpush1.msra.mxu0 0.0
          %852 = vmatprep.subr.mxu0 0.0
          %853 = vmatpush1.msra.mxu0 0.0
          %854 = vmatprep.subr.mxu0 0.0
          %855 = vmatpush1.msra.mxu0 0.0
          %856 = vmatprep.subr.mxu0 0.0
          %857 = vmatpush1.msra.mxu0 0.0
          %858 = vmatprep.subr.mxu0 0.0
          %859 = vmatpush1.msra.mxu0 0.0
          %860 = vmatprep.subr.mxu0 0.0
          %861 = vmatpush1.msra.mxu0 0.0
          %862 = vmatprep.subr.mxu0 0.0
          %863 = vmatpush1.msra.mxu0 0.0
          %864 = vmatprep.subr.mxu0 0.0
          %865 = vmatpush1.msra.mxu0 0.0
          %866 = vmatprep.subr.mxu0 0.0
          %867 = vmatpush1.msra.mxu0 0.0
          %868 = vmatprep.subr.mxu0 0.0
          %869 = vmatpush1.msra.mxu0 0.0
          %870 = vmatprep.subr.mxu0 0.0
          %871 = vmatpush1.msra.mxu0 0.0
          %872 = vmatprep.subr.mxu0 0.0
          %873 = vmatpush1.msra.mxu0 0.0
          %874 = vmatprep.subr.mxu0 0.0
          %875 = vmatpush1.msra.mxu0 0.0
          %876 = vmatprep.subr.mxu0 0.0
          %877 = vmatpush1.msra.mxu0 0.0
          %878 = vmatprep.subr.mxu0 0.0
          %879 = vmatpush1.msra.mxu0 0.0
          %880 = vmatprep.subr.mxu0 0.0
          %881 = vmatpush1.msra.mxu0 0.0
          %882 = vmatprep.subr.mxu0 0.0
          %883 = vmatpush1.msra.mxu0 0.0
          %884 = vmatprep.mubr.f32.mxu0 0.0
          %885 = vmatmul.mubr.f32.gmra.mrb[0].mxu0 %v815
          %v886 = vpop.f32.mrb[0].mxu0
          %v887 = vadd.f32 %v488, %v886
          %v888 = vpop.f32.mrb[0].mxu0
          %889 = vmatprep.mubr.f32.mxu0 0.0
          %890 = vmatmul.mubr.f32.gmra.mrb[0].mxu0 %v818
          %v891 = vpop.f32.mrb[0].mxu0
          %v892 = vadd.f32 %v488, %v891
          %v893 = vpop.f32.mrb[0].mxu0
          %894 = vdwg.mxu0
          %v895 = vmax.f32 %v887, 0.0
          %v896 = vmax.f32 %v892, 0.0
          %897 = vst.msk [vmem:[%s461 + $0x1] sm:$0xff] %vm456, %v895
          %898 = vst.msk [vmem:[%s461 + $0x9] sm:$0xff] %vm456, %v896
        $region56: #{one_three_conv_forward.1} parent=47 // pred_fallthru
          _
        %v899 = vld [vmem:[#allocation2] sm:$0xff]
        %v900 = vld [vmem:[#allocation2 + $0x8] sm:$0xff]
        %v901 = vld [vmem:[#allocation2 + $0x18] sm:$0xff]
        %v902 = vld [vmem:[#allocation2 + $0x20] sm:$0xff]
        %v903 = vld [vmem:[#allocation2 + $0x30] sm:$0xff]
        %v904 = vld [vmem:[#allocation2 + $0x38] sm:$0xff]
        %v905 = vld [vmem:[#allocation2 + $0x48] sm:$0xff]
        %v906 = vld [vmem:[#allocation2 + $0x50] sm:$0xff]
        %v907 = vld [vmem:[#allocation2 + $0x60] sm:$0xff]
        %v908 = vld [vmem:[#allocation2 + $0x68] sm:$0xff]
        %v909 = vld [vmem:[#allocation2 + $0x78] sm:$0xff]
        %v910 = vld [vmem:[#allocation2 + $0x80] sm:$0xff]
        %v911 = vld [vmem:[#allocation2 + $0x90] sm:$0xff]
        %v912 = vld [vmem:[#allocation2 + $0x98] sm:$0xff]
        %v913 = vld [vmem:[#allocation2 + $0xa8] sm:$0xff]
        %v914 = vld [vmem:[#allocation2 + $0xb0] sm:$0xff]
        %v915 = vld [vmem:[#allocation2 + $0x1] sm:$0xff]
        %v916 = vld [vmem:[#allocation2 + $0x9] sm:$0xff]
        %v917 = vld [vmem:[#allocation2 + $0x19] sm:$0xff]
        %v918 = vld [vmem:[#allocation2 + $0x21] sm:$0xff]
        %v919 = vld [vmem:[#allocation2 + $0x31] sm:$0xff]
        %v920 = vld [vmem:[#allocation2 + $0x39] sm:$0xff]
        %v921 = vld [vmem:[#allocation2 + $0x49] sm:$0xff]
        %v922 = vld [vmem:[#allocation2 + $0x51] sm:$0xff]
        %v923 = vld [vmem:[#allocation2 + $0x61] sm:$0xff]
        %v924 = vld [vmem:[#allocation2 + $0x69] sm:$0xff]
        %v925 = vld [vmem:[#allocation2 + $0x79] sm:$0xff]
        %v926 = vld [vmem:[#allocation2 + $0x81] sm:$0xff]
        %v927 = vld [vmem:[#allocation2 + $0x91] sm:$0xff]
        %v928 = vld [vmem:[#allocation2 + $0x99] sm:$0xff]
        %v929 = vld [vmem:[#allocation2 + $0xa9] sm:$0xff]
        %v930 = vld [vmem:[#allocation2 + $0xb1] sm:$0xff]
        %v931 = vld [vmem:[#allocation2 + $0x2] sm:$0xff]
        %v932 = vld [vmem:[#allocation2 + $0xa] sm:$0xff]
        %v933 = vld [vmem:[#allocation2 + $0x1a] sm:$0xff]
        %v934 = vld [vmem:[#allocation2 + $0x22] sm:$0xff]
        %v935 = vld [vmem:[#allocation2 + $0x32] sm:$0xff]
        %v936 = vld [vmem:[#allocation2 + $0x3a] sm:$0xff]
        %v937 = vld [vmem:[#allocation2 + $0x4a] sm:$0xff]
        %v938 = vld [vmem:[#allocation2 + $0x52] sm:$0xff]
        %v939 = vld [vmem:[#allocation2 + $0x62] sm:$0xff]
        %v940 = vld [vmem:[#allocation2 + $0x6a] sm:$0xff]
        %v941 = vld [vmem:[#allocation2 + $0x7a] sm:$0xff]
        %v942 = vld [vmem:[#allocation2 + $0x82] sm:$0xff]
        %v943 = vld [vmem:[#allocation2 + $0x92] sm:$0xff]
        %v944 = vld [vmem:[#allocation2 + $0x9a] sm:$0xff]
        %v945 = vld [vmem:[#allocation2 + $0xaa] sm:$0xff]
        %v946 = vld [vmem:[#allocation2 + $0xb2] sm:$0xff]
        %963 = vrot.lane.b32.xlu0 %v915, 4
        %v964 = vpop.permute.xlu0 %963
        %965 = vrot.lane.b32.xlu0 %v916, 4
        %v966 = vpop.permute.xlu0 %965
        %967 = vrot.lane.b32.xlu0 %v917, 4
        %v968 = vpop.permute.xlu0 %967
        %969 = vrot.lane.b32.xlu0 %v918, 4
        %v970 = vpop.permute.xlu0 %969
        %971 = vrot.lane.b32.xlu0 %v919, 4
        %v972 = vpop.permute.xlu0 %971
        %973 = vrot.lane.b32.xlu0 %v920, 4
        %v974 = vpop.permute.xlu0 %973
        %975 = vrot.lane.b32.xlu0 %v921, 4
        %v976 = vpop.permute.xlu0 %975
        %977 = vrot.lane.b32.xlu0 %v922, 4
        %v978 = vpop.permute.xlu0 %977
        %979 = vrot.lane.b32.xlu0 %v923, 4
        %v980 = vpop.permute.xlu0 %979
        %981 = vrot.lane.b32.xlu0 %v924, 4
        %v982 = vpop.permute.xlu0 %981
        %983 = vrot.lane.b32.xlu0 %v925, 4
        %v984 = vpop.permute.xlu0 %983
        %985 = vrot.lane.b32.xlu0 %v926, 4
        %v986 = vpop.permute.xlu0 %985
        %987 = vrot.lane.b32.xlu0 %v927, 4
        %v988 = vpop.permute.xlu0 %987
        %989 = vrot.lane.b32.xlu0 %v928, 4
        %v990 = vpop.permute.xlu0 %989
        %991 = vrot.lane.b32.xlu0 %v929, 4
        %v992 = vpop.permute.xlu0 %991
        %993 = vrot.lane.b32.xlu0 %v930, 4
        %v994 = vpop.permute.xlu0 %993
        %1027 = vrot.lane.b32.xlu0 %v931, 8
        %v1028 = vpop.permute.xlu0 %1027
        %1029 = vrot.lane.b32.xlu0 %v932, 8
        %v1030 = vpop.permute.xlu0 %1029
        %1031 = vrot.lane.b32.xlu0 %v933, 8
        %v1032 = vpop.permute.xlu0 %1031
        %1033 = vrot.lane.b32.xlu0 %v934, 8
        %v1034 = vpop.permute.xlu0 %1033
        %1035 = vrot.lane.b32.xlu0 %v935, 8
        %v1036 = vpop.permute.xlu0 %1035
        %1037 = vrot.lane.b32.xlu0 %v936, 8
        %v1038 = vpop.permute.xlu0 %1037
        %1039 = vrot.lane.b32.xlu0 %v937, 8
        %v1040 = vpop.permute.xlu0 %1039
        %1041 = vrot.lane.b32.xlu0 %v938, 8
        %v1042 = vpop.permute.xlu0 %1041
        %1043 = vrot.lane.b32.xlu0 %v939, 8
        %v1044 = vpop.permute.xlu0 %1043
        %1045 = vrot.lane.b32.xlu0 %v940, 8
        %v1046 = vpop.permute.xlu0 %1045
        %1047 = vrot.lane.b32.xlu0 %v941, 8
        %v1048 = vpop.permute.xlu0 %1047
        %1049 = vrot.lane.b32.xlu0 %v942, 8
        %v1050 = vpop.permute.xlu0 %1049
        %1051 = vrot.lane.b32.xlu0 %v943, 8
        %v1052 = vpop.permute.xlu0 %1051
        %1053 = vrot.lane.b32.xlu0 %v944, 8
        %v1054 = vpop.permute.xlu0 %1053
        %1055 = vrot.lane.b32.xlu0 %v945, 8
        %v1056 = vpop.permute.xlu0 %1055
        %1057 = vrot.lane.b32.xlu0 %v946, 8
        %v1058 = vpop.permute.xlu0 %1057
        %v1075 = vsel %vm456, %v899, %v964
        %v1076 = vsel %vm456, %v900, %v966
        %v1077 = vsel %vm456, %v901, %v968
        %v1078 = vsel %vm456, %v902, %v970
        %v1079 = vsel %vm456, %v903, %v972
        %v1080 = vsel %vm456, %v904, %v974
        %v1081 = vsel %vm456, %v905, %v976
        %v1082 = vsel %vm456, %v906, %v978
        %v1083 = vsel %vm456, %v907, %v980
        %v1084 = vsel %vm456, %v908, %v982
        %v1085 = vsel %vm456, %v909, %v984
        %v1086 = vsel %vm456, %v910, %v986
        %v1087 = vsel %vm456, %v911, %v988
        %v1088 = vsel %vm456, %v912, %v990
        %v1089 = vsel %vm456, %v913, %v992
        %v1090 = vsel %vm456, %v914, %v994
        %vm1091 = vcmask 64512
        %v1092 = vsel %vm1091, %v1075, %v1028
        %v1093 = vsel %vm1091, %v1076, %v1030
        %v1094 = vsel %vm1091, %v1077, %v1032
        %v1095 = vsel %vm1091, %v1078, %v1034
        %v1096 = vsel %vm1091, %v1079, %v1036
        %v1097 = vsel %vm1091, %v1080, %v1038
        %v1098 = vsel %vm1091, %v1081, %v1040
        %v1099 = vsel %vm1091, %v1082, %v1042
        %v1100 = vsel %vm1091, %v1083, %v1044
        %v1101 = vsel %vm1091, %v1084, %v1046
        %v1102 = vsel %vm1091, %v1085, %v1048
        %v1103 = vsel %vm1091, %v1086, %v1050
        %v1104 = vsel %vm1091, %v1087, %v1052
        %v1105 = vsel %vm1091, %v1088, %v1054
        %v1106 = vsel %vm1091, %v1089, %v1056
        %v1107 = vsel %vm1091, %v1090, %v1058
        %v1108 = vld [vmem:[%s5] sm:$0xff]
        %v1109 = vld [vmem:[%s5 + $0x8] sm:$0xf]
        %vm1110 = vcmask 97280
        %v1112 = vsel %vm1110, %v1092, 0
        %v1115 = vsel %vm1110, %v1093, 0
        %v1118 = vsel %vm1110, %v1094, 0
        %v1121 = vsel %vm1110, %v1095, 0
        %v1124 = vsel %vm1110, %v1096, 0
        %v1127 = vsel %vm1110, %v1097, 0
        %v1130 = vsel %vm1110, %v1098, 0
        %v1133 = vsel %vm1110, %v1099, 0
        %v1136 = vsel %vm1110, %v1100, 0
        %v1139 = vsel %vm1110, %v1101, 0
        %v1142 = vsel %vm1110, %v1102, 0
        %v1145 = vsel %vm1110, %v1103, 0
        %v1148 = vsel %vm1110, %v1104, 0
        %v1151 = vsel %vm1110, %v1105, 0
        %v1154 = vsel %vm1110, %v1106, 0
        %v1157 = vsel %vm1110, %v1107, 0
        %vm1159 = vcmask 1043456
        %v1161 = vsel %vm1159, %v1109, 0
        %1163 = vmatprep.subr.mxu0 0.0
        %1164 = vmatpush1.msra.mxu0 %v1108
        %1165 = vmatprep.subr.mxu0 0.0
        %1166 = vmatpush1.msra.mxu0 %v1161
        %1167 = vmatprep.subr.mxu0 0.0
        %1168 = vmatpush1.msra.mxu0 0.0
        %1169 = vmatprep.subr.mxu0 0.0
        %1170 = vmatpush1.msra.mxu0 0.0
        %1171 = vmatprep.subr.mxu0 0.0
        %1172 = vmatpush1.msra.mxu0 0.0
        %1173 = vmatprep.subr.mxu0 0.0
        %1174 = vmatpush1.msra.mxu0 0.0
        %1175 = vmatprep.subr.mxu0 0.0
        %1176 = vmatpush1.msra.mxu0 0.0
        %1177 = vmatprep.subr.mxu0 0.0
        %1178 = vmatpush1.msra.mxu0 0.0
        %1179 = vmatprep.subr.mxu0 0.0
        %1180 = vmatpush1.msra.mxu0 0.0
        %1181 = vmatprep.subr.mxu0 0.0
        %1182 = vmatpush1.msra.mxu0 0.0
        %1183 = vmatprep.subr.mxu0 0.0
        %1184 = vmatpush1.msra.mxu0 0.0
        %1185 = vmatprep.subr.mxu0 0.0
        %1186 = vmatpush1.msra.mxu0 0.0
        %1187 = vmatprep.subr.mxu0 0.0
        %1188 = vmatpush1.msra.mxu0 0.0
        %1189 = vmatprep.subr.mxu0 0.0
        %1190 = vmatpush1.msra.mxu0 0.0
        %1191 = vmatprep.subr.mxu0 0.0
        %1192 = vmatpush1.msra.mxu0 0.0
        %1193 = vmatprep.subr.mxu0 0.0
        %1194 = vmatpush1.msra.mxu0 0.0
        %1195 = vmatprep.subr.mxu0 0.0
        %1196 = vmatpush1.msra.mxu0 0.0
        %1197 = vmatprep.subr.mxu0 0.0
        %1198 = vmatpush1.msra.mxu0 0.0
        %1199 = vmatprep.subr.mxu0 0.0
        %1200 = vmatpush1.msra.mxu0 0.0
        %1201 = vmatprep.subr.mxu0 0.0
        %1202 = vmatpush1.msra.mxu0 0.0
        %1203 = vmatprep.subr.mxu0 0.0
        %1204 = vmatpush1.msra.mxu0 0.0
        %1205 = vmatprep.subr.mxu0 0.0
        %1206 = vmatpush1.msra.mxu0 0.0
        %1207 = vmatprep.subr.mxu0 0.0
        %1208 = vmatpush1.msra.mxu0 0.0
        %1209 = vmatprep.subr.mxu0 0.0
        %1210 = vmatpush1.msra.mxu0 0.0
        %1211 = vmatprep.subr.mxu0 0.0
        %1212 = vmatpush1.msra.mxu0 0.0
        %1213 = vmatprep.subr.mxu0 0.0
        %1214 = vmatpush1.msra.mxu0 0.0
        %1215 = vmatprep.subr.mxu0 0.0
        %1216 = vmatpush1.msra.mxu0 0.0
        %1217 = vmatprep.subr.mxu0 0.0
        %1218 = vmatpush1.msra.mxu0 0.0
        %1219 = vmatprep.subr.mxu0 0.0
        %1220 = vmatpush1.msra.mxu0 0.0
        %1221 = vmatprep.subr.mxu0 0.0
        %1222 = vmatpush1.msra.mxu0 0.0
        %1223 = vmatprep.subr.mxu0 0.0
        %1224 = vmatpush1.msra.mxu0 0.0
        %1225 = vmatprep.subr.mxu0 0.0
        %1226 = vmatpush1.msra.mxu0 0.0
        %1227 = vmatprep.mubr.f32.mxu0 0.0
        %1228 = vmatmul.mubr.f32.gmra.mrb[0].mxu0 %v1112
        %v1229 = vpop.f32.mrb[0].mxu0
        %v1230 = vadd.f32 0.0, %v1229
        %v1231 = vpop.f32.mrb[0].mxu0
        %1232 = vmatprep.mubr.f32.mxu0 0.0
        %1233 = vmatmul.mubr.f32.gmra.mrb[0].mxu0 %v1115
        %v1234 = vpop.f32.mrb[0].mxu0
        %v1235 = vadd.f32 0.0, %v1234
        %v1236 = vpop.f32.mrb[0].mxu0
        %1237 = vmatprep.mubr.f32.mxu0 0.0
        %1238 = vmatmul.mubr.f32.gmra.mrb[0].mxu0 %v1118
        %v1239 = vpop.f32.mrb[0].mxu0
        %v1240 = vadd.f32 0.0, %v1239
        %v1241 = vpop.f32.mrb[0].mxu0
        %1242 = vmatprep.mubr.f32.mxu0 0.0
        %1243 = vmatmul.mubr.f32.gmra.mrb[0].mxu0 %v1121
        %v1244 = vpop.f32.mrb[0].mxu0
        %v1245 = vadd.f32 0.0, %v1244
        %v1246 = vpop.f32.mrb[0].mxu0
        %1247 = vmatprep.mubr.f32.mxu0 0.0
        %1248 = vmatmul.mubr.f32.gmra.mrb[0].mxu0 %v1124
        %v1249 = vpop.f32.mrb[0].mxu0
        %v1250 = vadd.f32 0.0, %v1249
        %v1251 = vpop.f32.mrb[0].mxu0
        %1252 = vmatprep.mubr.f32.mxu0 0.0
        %1253 = vmatmul.mubr.f32.gmra.mrb[0].mxu0 %v1127
        %v1254 = vpop.f32.mrb[0].mxu0
        %v1255 = vadd.f32 0.0, %v1254
        %v1256 = vpop.f32.mrb[0].mxu0
        %1257 = vmatprep.mubr.f32.mxu0 0.0
        %1258 = vmatmul.mubr.f32.gmra.mrb[0].mxu0 %v1130
        %v1259 = vpop.f32.mrb[0].mxu0
        %v1260 = vadd.f32 0.0, %v1259
        %v1261 = vpop.f32.mrb[0].mxu0
        %1262 = vmatprep.mubr.f32.mxu0 0.0
        %1263 = vmatmul.mubr.f32.gmra.mrb[0].mxu0 %v1133
        %v1264 = vpop.f32.mrb[0].mxu0
        %v1265 = vadd.f32 0.0, %v1264
        %v1266 = vpop.f32.mrb[0].mxu0
        %1267 = vmatprep.mubr.f32.mxu0 0.0
        %1268 = vmatmul.mubr.f32.gmra.mrb[0].mxu0 %v1136
        %v1269 = vpop.f32.mrb[0].mxu0
        %v1270 = vadd.f32 0.0, %v1269
        %v1271 = vpop.f32.mrb[0].mxu0
        %1272 = vmatprep.mubr.f32.mxu0 0.0
        %1273 = vmatmul.mubr.f32.gmra.mrb[0].mxu0 %v1139
        %v1274 = vpop.f32.mrb[0].mxu0
        %v1275 = vadd.f32 0.0, %v1274
        %v1276 = vpop.f32.mrb[0].mxu0
        %1277 = vmatprep.mubr.f32.mxu0 0.0
        %1278 = vmatmul.mubr.f32.gmra.mrb[0].mxu0 %v1142
        %v1279 = vpop.f32.mrb[0].mxu0
        %v1280 = vadd.f32 0.0, %v1279
        %v1281 = vpop.f32.mrb[0].mxu0
        %1282 = vmatprep.mubr.f32.mxu0 0.0
        %1283 = vmatmul.mubr.f32.gmra.mrb[0].mxu0 %v1145
        %v1284 = vpop.f32.mrb[0].mxu0
        %v1285 = vadd.f32 0.0, %v1284
        %v1286 = vpop.f32.mrb[0].mxu0
        %1287 = vmatprep.mubr.f32.mxu0 0.0
        %1288 = vmatmul.mubr.f32.gmra.mrb[0].mxu0 %v1148
        %v1289 = vpop.f32.mrb[0].mxu0
        %v1290 = vadd.f32 0.0, %v1289
        %v1291 = vpop.f32.mrb[0].mxu0
        %1292 = vmatprep.mubr.f32.mxu0 0.0
        %1293 = vmatmul.mubr.f32.gmra.mrb[0].mxu0 %v1151
        %v1294 = vpop.f32.mrb[0].mxu0
        %v1295 = vadd.f32 0.0, %v1294
        %v1296 = vpop.f32.mrb[0].mxu0
        %1297 = vmatprep.mubr.f32.mxu0 0.0
        %1298 = vmatmul.mubr.f32.gmra.mrb[0].mxu0 %v1154
        %v1299 = vpop.f32.mrb[0].mxu0
        %v1300 = vadd.f32 0.0, %v1299
        %v1301 = vpop.f32.mrb[0].mxu0
        %1302 = vmatprep.mubr.f32.mxu0 0.0
        %1303 = vmatmul.mubr.f32.gmra.mrb[0].mxu0 %v1157
        %v1304 = vpop.f32.mrb[0].mxu0
        %v1305 = vadd.f32 0.0, %v1304
        %v1306 = vpop.f32.mrb[0].mxu0
        %1307 = vdwg.mxu0
        %vm1308 = vcmask 261120
        %1309 = vst.msk [vmem:[#allocation3] sm:$0xff] %vm1308, %v1230
        %1310 = vst.msk [vmem:[#allocation3 + $0x8] sm:$0xff] %vm1308, %v1235
        %1311 = vst.msk [vmem:[#allocation3 + $0x10] sm:$0xff] %vm1308, %v1240
        %1312 = vst.msk [vmem:[#allocation3 + $0x18] sm:$0xff] %vm1308, %v1245
        %1313 = vst.msk [vmem:[#allocation3 + $0x20] sm:$0xff] %vm1308, %v1250
        %1314 = vst.msk [vmem:[#allocation3 + $0x28] sm:$0xff] %vm1308, %v1255
        %1315 = vst.msk [vmem:[#allocation3 + $0x30] sm:$0xff] %vm1308, %v1260
        %1316 = vst.msk [vmem:[#allocation3 + $0x38] sm:$0xff] %vm1308, %v1265
        %1317 = vst.msk [vmem:[#allocation3 + $0x40] sm:$0xff] %vm1308, %v1270
        %1318 = vst.msk [vmem:[#allocation3 + $0x48] sm:$0xff] %vm1308, %v1275
        %1319 = vst.msk [vmem:[#allocation3 + $0x50] sm:$0xff] %vm1308, %v1280
        %1320 = vst.msk [vmem:[#allocation3 + $0x58] sm:$0xff] %vm1308, %v1285
        %1321 = vst.msk [vmem:[#allocation3 + $0x60] sm:$0xff] %vm1308, %v1290
        %1322 = vst.msk [vmem:[#allocation3 + $0x68] sm:$0xff] %vm1308, %v1295
        %1323 = vst.msk [vmem:[#allocation3 + $0x70] sm:$0xff] %vm1308, %v1300
        %1324 = vst.msk [vmem:[#allocation3 + $0x78] sm:$0xff] %vm1308, %v1305
        %v1325 = vld [vmem:[%s700] sm:$0xff]
        %v1326 = vld [vmem:[%s700 + $0x8] sm:$0xff]
        %v1327 = vld [vmem:[%s700 + $0x18] sm:$0xff]
        %v1328 = vld [vmem:[%s700 + $0x20] sm:$0xff]
        %v1329 = vld [vmem:[%s700 + $0x30] sm:$0xff]
        %v1330 = vld [vmem:[%s700 + $0x38] sm:$0xff]
        %v1331 = vld [vmem:[%s700 + $0x48] sm:$0xff]
        %v1332 = vld [vmem:[%s700 + $0x50] sm:$0xff]
        %v1333 = vld [vmem:[%s700 + $0x60] sm:$0xff]
        %v1334 = vld [vmem:[%s700 + $0x68] sm:$0xff]
        %v1335 = vld [vmem:[%s700 + $0x78] sm:$0xff]
        %v1336 = vld [vmem:[%s700 + $0x80] sm:$0xff]
        %v1337 = vld [vmem:[%s700 + $0x90] sm:$0xff]
        %v1338 = vld [vmem:[%s700 + $0x98] sm:$0xff]
        %v1339 = vld [vmem:[%s700 + $0xa8] sm:$0xff]
        %v1340 = vld [vmem:[%s700 + $0xb0] sm:$0xff]
        %v1341 = vld [vmem:[%s700 + $0x1] sm:$0xff]
        %v1342 = vld [vmem:[%s700 + $0x9] sm:$0xff]
        %v1343 = vld [vmem:[%s700 + $0x19] sm:$0xff]
        %v1344 = vld [vmem:[%s700 + $0x21] sm:$0xff]
        %v1345 = vld [vmem:[%s700 + $0x31] sm:$0xff]
        %v1346 = vld [vmem:[%s700 + $0x39] sm:$0xff]
        %v1347 = vld [vmem:[%s700 + $0x49] sm:$0xff]
        %v1348 = vld [vmem:[%s700 + $0x51] sm:$0xff]
        %v1349 = vld [vmem:[%s700 + $0x61] sm:$0xff]
        %v1350 = vld [vmem:[%s700 + $0x69] sm:$0xff]
        %v1351 = vld [vmem:[%s700 + $0x79] sm:$0xff]
        %v1352 = vld [vmem:[%s700 + $0x81] sm:$0xff]
        %v1353 = vld [vmem:[%s700 + $0x91] sm:$0xff]
        %v1354 = vld [vmem:[%s700 + $0x99] sm:$0xff]
        %v1355 = vld [vmem:[%s700 + $0xa9] sm:$0xff]
        %v1356 = vld [vmem:[%s700 + $0xb1] sm:$0xff]
        %v1357 = vld [vmem:[%s700 + $0x2] sm:$0xff]
        %v1358 = vld [vmem:[%s700 + $0xa] sm:$0xff]
        %v1359 = vld [vmem:[%s700 + $0x1a] sm:$0xff]
        %v1360 = vld [vmem:[%s700 + $0x22] sm:$0xff]
        %v1361 = vld [vmem:[%s700 + $0x32] sm:$0xff]
        %v1362 = vld [vmem:[%s700 + $0x3a] sm:$0xff]
        %v1363 = vld [vmem:[%s700 + $0x4a] sm:$0xff]
        %v1364 = vld [vmem:[%s700 + $0x52] sm:$0xff]
        %v1365 = vld [vmem:[%s700 + $0x62] sm:$0xff]
        %v1366 = vld [vmem:[%s700 + $0x6a] sm:$0xff]
        %v1367 = vld [vmem:[%s700 + $0x7a] sm:$0xff]
        %v1368 = vld [vmem:[%s700 + $0x82] sm:$0xff]
        %v1369 = vld [vmem:[%s700 + $0x92] sm:$0xff]
        %v1370 = vld [vmem:[%s700 + $0x9a] sm:$0xff]
        %v1371 = vld [vmem:[%s700 + $0xaa] sm:$0xff]
        %v1372 = vld [vmem:[%s700 + $0xb2] sm:$0xff]
        %1389 = vrot.lane.b32.xlu0 %v1341, 4
        %v1390 = vpop.permute.xlu0 %1389
        %1391 = vrot.lane.b32.xlu0 %v1342, 4
        %v1392 = vpop.permute.xlu0 %1391
        %1393 = vrot.lane.b32.xlu0 %v1343, 4
        %v1394 = vpop.permute.xlu0 %1393
        %1395 = vrot.lane.b32.xlu0 %v1344, 4
        %v1396 = vpop.permute.xlu0 %1395
        %1397 = vrot.lane.b32.xlu0 %v1345, 4
        %v1398 = vpop.permute.xlu0 %1397
        %1399 = vrot.lane.b32.xlu0 %v1346, 4
        %v1400 = vpop.permute.xlu0 %1399
        %1401 = vrot.lane.b32.xlu0 %v1347, 4
        %v1402 = vpop.permute.xlu0 %1401
        %1403 = vrot.lane.b32.xlu0 %v1348, 4
        %v1404 = vpop.permute.xlu0 %1403
        %1405 = vrot.lane.b32.xlu0 %v1349, 4
        %v1406 = vpop.permute.xlu0 %1405
        %1407 = vrot.lane.b32.xlu0 %v1350, 4
        %v1408 = vpop.permute.xlu0 %1407
        %1409 = vrot.lane.b32.xlu0 %v1351, 4
        %v1410 = vpop.permute.xlu0 %1409
        %1411 = vrot.lane.b32.xlu0 %v1352, 4
        %v1412 = vpop.permute.xlu0 %1411
        %1413 = vrot.lane.b32.xlu0 %v1353, 4
        %v1414 = vpop.permute.xlu0 %1413
        %1415 = vrot.lane.b32.xlu0 %v1354, 4
        %v1416 = vpop.permute.xlu0 %1415
        %1417 = vrot.lane.b32.xlu0 %v1355, 4
        %v1418 = vpop.permute.xlu0 %1417
        %1419 = vrot.lane.b32.xlu0 %v1356, 4
        %v1420 = vpop.permute.xlu0 %1419
        %1453 = vrot.lane.b32.xlu0 %v1357, 8
        %v1454 = vpop.permute.xlu0 %1453
        %1455 = vrot.lane.b32.xlu0 %v1358, 8
        %v1456 = vpop.permute.xlu0 %1455
        %1457 = vrot.lane.b32.xlu0 %v1359, 8
        %v1458 = vpop.permute.xlu0 %1457
        %1459 = vrot.lane.b32.xlu0 %v1360, 8
        %v1460 = vpop.permute.xlu0 %1459
        %1461 = vrot.lane.b32.xlu0 %v1361, 8
        %v1462 = vpop.permute.xlu0 %1461
        %1463 = vrot.lane.b32.xlu0 %v1362, 8
        %v1464 = vpop.permute.xlu0 %1463
        %1465 = vrot.lane.b32.xlu0 %v1363, 8
        %v1466 = vpop.permute.xlu0 %1465
        %1467 = vrot.lane.b32.xlu0 %v1364, 8
        %v1468 = vpop.permute.xlu0 %1467
        %1469 = vrot.lane.b32.xlu0 %v1365, 8
        %v1470 = vpop.permute.xlu0 %1469
        %1471 = vrot.lane.b32.xlu0 %v1366, 8
        %v1472 = vpop.permute.xlu0 %1471
        %1473 = vrot.lane.b32.xlu0 %v1367, 8
        %v1474 = vpop.permute.xlu0 %1473
        %1475 = vrot.lane.b32.xlu0 %v1368, 8
        %v1476 = vpop.permute.xlu0 %1475
        %1477 = vrot.lane.b32.xlu0 %v1369, 8
        %v1478 = vpop.permute.xlu0 %1477
        %1479 = vrot.lane.b32.xlu0 %v1370, 8
        %v1480 = vpop.permute.xlu0 %1479
        %1481 = vrot.lane.b32.xlu0 %v1371, 8
        %v1482 = vpop.permute.xlu0 %1481
        %1483 = vrot.lane.b32.xlu0 %v1372, 8
        %v1484 = vpop.permute.xlu0 %1483
        %v1501 = vsel %vm456, %v1325, %v1390
        %v1502 = vsel %vm456, %v1326, %v1392
        %v1503 = vsel %vm456, %v1327, %v1394
        %v1504 = vsel %vm456, %v1328, %v1396
        %v1505 = vsel %vm456, %v1329, %v1398
        %v1506 = vsel %vm456, %v1330, %v1400
        %v1507 = vsel %vm456, %v1331, %v1402
        %v1508 = vsel %vm456, %v1332, %v1404
        %v1509 = vsel %vm456, %v1333, %v1406
        %v1510 = vsel %vm456, %v1334, %v1408
        %v1511 = vsel %vm456, %v1335, %v1410
        %v1512 = vsel %vm456, %v1336, %v1412
        %v1513 = vsel %vm456, %v1337, %v1414
        %v1514 = vsel %vm456, %v1338, %v1416
        %v1515 = vsel %vm456, %v1339, %v1418
        %v1516 = vsel %vm456, %v1340, %v1420
        %v1517 = vsel %vm1091, %v1501, %v1454
        %v1518 = vsel %vm1091, %v1502, %v1456
        %v1519 = vsel %vm1091, %v1503, %v1458
        %v1520 = vsel %vm1091, %v1504, %v1460
        %v1521 = vsel %vm1091, %v1505, %v1462
        %v1522 = vsel %vm1091, %v1506, %v1464
        %v1523 = vsel %vm1091, %v1507, %v1466
        %v1524 = vsel %vm1091, %v1508, %v1468
        %v1525 = vsel %vm1091, %v1509, %v1470
        %v1526 = vsel %vm1091, %v1510, %v1472
        %v1527 = vsel %vm1091, %v1511, %v1474
        %v1528 = vsel %vm1091, %v1512, %v1476
        %v1529 = vsel %vm1091, %v1513, %v1478
        %v1530 = vsel %vm1091, %v1514, %v1480
        %v1531 = vsel %vm1091, %v1515, %v1482
        %v1532 = vsel %vm1091, %v1516, %v1484
        %s1533 = scalar_lea.vmem %s5, 16
        %v1534 = vld [vmem:[%s1533] sm:$0xff]
        %v1535 = vld [vmem:[%s1533 + $0x8] sm:$0xf]
        %v1537 = vsel %vm1110, %v1517, 0
        %v1540 = vsel %vm1110, %v1518, 0
        %v1543 = vsel %vm1110, %v1519, 0
        %v1546 = vsel %vm1110, %v1520, 0
        %v1549 = vsel %vm1110, %v1521, 0
        %v1552 = vsel %vm1110, %v1522, 0
        %v1555 = vsel %vm1110, %v1523, 0
        %v1558 = vsel %vm1110, %v1524, 0
        %v1561 = vsel %vm1110, %v1525, 0
        %v1564 = vsel %vm1110, %v1526, 0
        %v1567 = vsel %vm1110, %v1527, 0
        %v1570 = vsel %vm1110, %v1528, 0
        %v1573 = vsel %vm1110, %v1529, 0
        %v1576 = vsel %vm1110, %v1530, 0
        %v1579 = vsel %vm1110, %v1531, 0
        %v1582 = vsel %vm1110, %v1532, 0
        %v1585 = vsel %vm1159, %v1535, 0
        %1587 = vmatprep.subr.mxu0 0.0
        %1588 = vmatpush1.msra.mxu0 %v1534
        %1589 = vmatprep.subr.mxu0 0.0
        %1590 = vmatpush1.msra.mxu0 %v1585
        %1591 = vmatprep.subr.mxu0 0.0
        %1592 = vmatpush1.msra.mxu0 0.0
        %1593 = vmatprep.subr.mxu0 0.0
        %1594 = vmatpush1.msra.mxu0 0.0
        %1595 = vmatprep.subr.mxu0 0.0
        %1596 = vmatpush1.msra.mxu0 0.0
        %1597 = vmatprep.subr.mxu0 0.0
        %1598 = vmatpush1.msra.mxu0 0.0
        %1599 = vmatprep.subr.mxu0 0.0
        %1600 = vmatpush1.msra.mxu0 0.0
        %1601 = vmatprep.subr.mxu0 0.0
        %1602 = vmatpush1.msra.mxu0 0.0
        %1603 = vmatprep.subr.mxu0 0.0
        %1604 = vmatpush1.msra.mxu0 0.0
        %1605 = vmatprep.subr.mxu0 0.0
        %1606 = vmatpush1.msra.mxu0 0.0
        %1607 = vmatprep.subr.mxu0 0.0
        %1608 = vmatpush1.msra.mxu0 0.0
        %1609 = vmatprep.subr.mxu0 0.0
        %1610 = vmatpush1.msra.mxu0 0.0
        %1611 = vmatprep.subr.mxu0 0.0
        %1612 = vmatpush1.msra.mxu0 0.0
        %1613 = vmatprep.subr.mxu0 0.0
        %1614 = vmatpush1.msra.mxu0 0.0
        %1615 = vmatprep.subr.mxu0 0.0
        %1616 = vmatpush1.msra.mxu0 0.0
        %1617 = vmatprep.subr.mxu0 0.0
        %1618 = vmatpush1.msra.mxu0 0.0
        %1619 = vmatprep.subr.mxu0 0.0
        %1620 = vmatpush1.msra.mxu0 0.0
        %1621 = vmatprep.subr.mxu0 0.0
        %1622 = vmatpush1.msra.mxu0 0.0
        %1623 = vmatprep.subr.mxu0 0.0
        %1624 = vmatpush1.msra.mxu0 0.0
        %1625 = vmatprep.subr.mxu0 0.0
        %1626 = vmatpush1.msra.mxu0 0.0
        %1627 = vmatprep.subr.mxu0 0.0
        %1628 = vmatpush1.msra.mxu0 0.0
        %1629 = vmatprep.subr.mxu0 0.0
        %1630 = vmatpush1.msra.mxu0 0.0
        %1631 = vmatprep.subr.mxu0 0.0
        %1632 = vmatpush1.msra.mxu0 0.0
        %1633 = vmatprep.subr.mxu0 0.0
        %1634 = vmatpush1.msra.mxu0 0.0
        %1635 = vmatprep.subr.mxu0 0.0
        %1636 = vmatpush1.msra.mxu0 0.0
        %1637 = vmatprep.subr.mxu0 0.0
        %1638 = vmatpush1.msra.mxu0 0.0
        %1639 = vmatprep.subr.mxu0 0.0
        %1640 = vmatpush1.msra.mxu0 0.0
        %1641 = vmatprep.subr.mxu0 0.0
        %1642 = vmatpush1.msra.mxu0 0.0
        %1643 = vmatprep.subr.mxu0 0.0
        %1644 = vmatpush1.msra.mxu0 0.0
        %1645 = vmatprep.subr.mxu0 0.0
        %1646 = vmatpush1.msra.mxu0 0.0
        %1647 = vmatprep.subr.mxu0 0.0
        %1648 = vmatpush1.msra.mxu0 0.0
        %1649 = vmatprep.subr.mxu0 0.0
        %1650 = vmatpush1.msra.mxu0 0.0
        %1651 = vmatprep.mubr.f32.mxu0 0.0
        %1652 = vmatmul.mubr.f32.gmra.mrb[0].mxu0 %v1537
        %v1653 = vpop.f32.mrb[0].mxu0
        %v1654 = vadd.f32 0.0, %v1653
        %v1655 = vpop.f32.mrb[0].mxu0
        %1656 = vmatprep.mubr.f32.mxu0 0.0
        %1657 = vmatmul.mubr.f32.gmra.mrb[0].mxu0 %v1540
        %v1658 = vpop.f32.mrb[0].mxu0
        %v1659 = vadd.f32 0.0, %v1658
        %v1660 = vpop.f32.mrb[0].mxu0
        %1661 = vmatprep.mubr.f32.mxu0 0.0
        %1662 = vmatmul.mubr.f32.gmra.mrb[0].mxu0 %v1543
        %v1663 = vpop.f32.mrb[0].mxu0
        %v1664 = vadd.f32 0.0, %v1663
        %v1665 = vpop.f32.mrb[0].mxu0
        %1666 = vmatprep.mubr.f32.mxu0 0.0
        %1667 = vmatmul.mubr.f32.gmra.mrb[0].mxu0 %v1546
        %v1668 = vpop.f32.mrb[0].mxu0
        %v1669 = vadd.f32 0.0, %v1668
        %v1670 = vpop.f32.mrb[0].mxu0
        %1671 = vmatprep.mubr.f32.mxu0 0.0
        %1672 = vmatmul.mubr.f32.gmra.mrb[0].mxu0 %v1549
        %v1673 = vpop.f32.mrb[0].mxu0
        %v1674 = vadd.f32 0.0, %v1673
        %v1675 = vpop.f32.mrb[0].mxu0
        %1676 = vmatprep.mubr.f32.mxu0 0.0
        %1677 = vmatmul.mubr.f32.gmra.mrb[0].mxu0 %v1552
        %v1678 = vpop.f32.mrb[0].mxu0
        %v1679 = vadd.f32 0.0, %v1678
        %v1680 = vpop.f32.mrb[0].mxu0
        %1681 = vmatprep.mubr.f32.mxu0 0.0
        %1682 = vmatmul.mubr.f32.gmra.mrb[0].mxu0 %v1555
        %v1683 = vpop.f32.mrb[0].mxu0
        %v1684 = vadd.f32 0.0, %v1683
        %v1685 = vpop.f32.mrb[0].mxu0
        %1686 = vmatprep.mubr.f32.mxu0 0.0
        %1687 = vmatmul.mubr.f32.gmra.mrb[0].mxu0 %v1558
        %v1688 = vpop.f32.mrb[0].mxu0
        %v1689 = vadd.f32 0.0, %v1688
        %v1690 = vpop.f32.mrb[0].mxu0
        %1691 = vmatprep.mubr.f32.mxu0 0.0
        %1692 = vmatmul.mubr.f32.gmra.mrb[0].mxu0 %v1561
        %v1693 = vpop.f32.mrb[0].mxu0
        %v1694 = vadd.f32 0.0, %v1693
        %v1695 = vpop.f32.mrb[0].mxu0
        %1696 = vmatprep.mubr.f32.mxu0 0.0
        %1697 = vmatmul.mubr.f32.gmra.mrb[0].mxu0 %v1564
        %v1698 = vpop.f32.mrb[0].mxu0
        %v1699 = vadd.f32 0.0, %v1698
        %v1700 = vpop.f32.mrb[0].mxu0
        %1701 = vmatprep.mubr.f32.mxu0 0.0
        %1702 = vmatmul.mubr.f32.gmra.mrb[0].mxu0 %v1567
        %v1703 = vpop.f32.mrb[0].mxu0
        %v1704 = vadd.f32 0.0, %v1703
        %v1705 = vpop.f32.mrb[0].mxu0
        %1706 = vmatprep.mubr.f32.mxu0 0.0
        %1707 = vmatmul.mubr.f32.gmra.mrb[0].mxu0 %v1570
        %v1708 = vpop.f32.mrb[0].mxu0
        %v1709 = vadd.f32 0.0, %v1708
        %v1710 = vpop.f32.mrb[0].mxu0
        %1711 = vmatprep.mubr.f32.mxu0 0.0
        %1712 = vmatmul.mubr.f32.gmra.mrb[0].mxu0 %v1573
        %v1713 = vpop.f32.mrb[0].mxu0
        %v1714 = vadd.f32 0.0, %v1713
        %v1715 = vpop.f32.mrb[0].mxu0
        %1716 = vmatprep.mubr.f32.mxu0 0.0
        %1717 = vmatmul.mubr.f32.gmra.mrb[0].mxu0 %v1576
        %v1718 = vpop.f32.mrb[0].mxu0
        %v1719 = vadd.f32 0.0, %v1718
        %v1720 = vpop.f32.mrb[0].mxu0
        %1721 = vmatprep.mubr.f32.mxu0 0.0
        %1722 = vmatmul.mubr.f32.gmra.mrb[0].mxu0 %v1579
        %v1723 = vpop.f32.mrb[0].mxu0
        %v1724 = vadd.f32 0.0, %v1723
        %v1725 = vpop.f32.mrb[0].mxu0
        %1726 = vmatprep.mubr.f32.mxu0 0.0
        %1727 = vmatmul.mubr.f32.gmra.mrb[0].mxu0 %v1582
        %v1728 = vpop.f32.mrb[0].mxu0
        %v1729 = vadd.f32 0.0, %v1728
        %v1730 = vpop.f32.mrb[0].mxu0
        %1731 = vdwg.mxu0
        %v1732 = vld [vmem:[#allocation3] sm:$0xff]
        %v1733 = vld [vmem:[#allocation3 + $0x8] sm:$0xff]
        %v1734 = vld [vmem:[#allocation3 + $0x10] sm:$0xff]
        %v1735 = vld [vmem:[#allocation3 + $0x18] sm:$0xff]
        %v1736 = vld [vmem:[#allocation3 + $0x20] sm:$0xff]
        %v1737 = vld [vmem:[#allocation3 + $0x28] sm:$0xff]
        %v1738 = vld [vmem:[#allocation3 + $0x30] sm:$0xff]
        %v1739 = vld [vmem:[#allocation3 + $0x38] sm:$0xff]
        %v1740 = vld [vmem:[#allocation3 + $0x40] sm:$0xff]
        %v1741 = vld [vmem:[#allocation3 + $0x48] sm:$0xff]
        %v1742 = vld [vmem:[#allocation3 + $0x50] sm:$0xff]
        %v1743 = vld [vmem:[#allocation3 + $0x58] sm:$0xff]
        %v1744 = vld [vmem:[#allocation3 + $0x60] sm:$0xff]
        %v1745 = vld [vmem:[#allocation3 + $0x68] sm:$0xff]
        %v1746 = vld [vmem:[#allocation3 + $0x70] sm:$0xff]
        %v1747 = vld [vmem:[#allocation3 + $0x78] sm:$0xff]
        %v1748 = vadd.f32 %v1732, %v1654
        %v1749 = vadd.f32 %v1733, %v1659
        %v1750 = vadd.f32 %v1734, %v1664
        %v1751 = vadd.f32 %v1735, %v1669
        %v1752 = vadd.f32 %v1736, %v1674
        %v1753 = vadd.f32 %v1737, %v1679
        %v1754 = vadd.f32 %v1738, %v1684
        %v1755 = vadd.f32 %v1739, %v1689
        %v1756 = vadd.f32 %v1740, %v1694
        %v1757 = vadd.f32 %v1741, %v1699
        %v1758 = vadd.f32 %v1742, %v1704
        %v1759 = vadd.f32 %v1743, %v1709
        %v1760 = vadd.f32 %v1744, %v1714
        %v1761 = vadd.f32 %v1745, %v1719
        %v1762 = vadd.f32 %v1746, %v1724
        %v1763 = vadd.f32 %v1747, %v1729
        %1764 = vst.msk [vmem:[#allocation3] sm:$0xff] %vm1308, %v1748
        %1765 = vst.msk [vmem:[#allocation3 + $0x8] sm:$0xff] %vm1308, %v1749
        %1766 = vst.msk [vmem:[#allocation3 + $0x10] sm:$0xff] %vm1308, %v1750
        %1767 = vst.msk [vmem:[#allocation3 + $0x18] sm:$0xff] %vm1308, %v1751
        %1768 = vst.msk [vmem:[#allocation3 + $0x20] sm:$0xff] %vm1308, %v1752
        %1769 = vst.msk [vmem:[#allocation3 + $0x28] sm:$0xff] %vm1308, %v1753
        %1770 = vst.msk [vmem:[#allocation3 + $0x30] sm:$0xff] %vm1308, %v1754
        %1771 = vst.msk [vmem:[#allocation3 + $0x38] sm:$0xff] %vm1308, %v1755
        %1772 = vst.msk [vmem:[#allocation3 + $0x40] sm:$0xff] %vm1308, %v1756
        %1773 = vst.msk [vmem:[#allocation3 + $0x48] sm:$0xff] %vm1308, %v1757
        %1774 = vst.msk [vmem:[#allocation3 + $0x50] sm:$0xff] %vm1308, %v1758
        %1775 = vst.msk [vmem:[#allocation3 + $0x58] sm:$0xff] %vm1308, %v1759
        %1776 = vst.msk [vmem:[#allocation3 + $0x60] sm:$0xff] %vm1308, %v1760
        %1777 = vst.msk [vmem:[#allocation3 + $0x68] sm:$0xff] %vm1308, %v1761
        %1778 = vst.msk [vmem:[#allocation3 + $0x70] sm:$0xff] %vm1308, %v1762
        %1779 = vst.msk [vmem:[#allocation3 + $0x78] sm:$0xff] %vm1308, %v1763
        %s1780 = scalar_lea.vmem [#allocation2], 48
        %v1781 = vld [vmem:[%s1780] sm:$0xff]
        %v1782 = vld [vmem:[%s1780 + $0x8] sm:$0xff]
        %v1783 = vld [vmem:[%s1780 + $0x18] sm:$0xff]
        %v1784 = vld [vmem:[%s1780 + $0x20] sm:$0xff]
        %v1785 = vld [vmem:[%s1780 + $0x30] sm:$0xff]
        %v1786 = vld [vmem:[%s1780 + $0x38] sm:$0xff]
        %v1787 = vld [vmem:[%s1780 + $0x48] sm:$0xff]
        %v1788 = vld [vmem:[%s1780 + $0x50] sm:$0xff]
        %v1789 = vld [vmem:[%s1780 + $0x60] sm:$0xff]
        %v1790 = vld [vmem:[%s1780 + $0x68] sm:$0xff]
        %v1791 = vld [vmem:[%s1780 + $0x78] sm:$0xff]
        %v1792 = vld [vmem:[%s1780 + $0x80] sm:$0xff]
        %v1793 = vld [vmem:[%s1780 + $0x90] sm:$0xff]
        %v1794 = vld [vmem:[%s1780 + $0x98] sm:$0xff]
        %v1795 = vld [vmem:[%s1780 + $0xa8] sm:$0xff]
        %v1796 = vld [vmem:[%s1780 + $0xb0] sm:$0xff]
        %v1797 = vld [vmem:[%s1780 + $0x1] sm:$0xff]
        %v1798 = vld [vmem:[%s1780 + $0x9] sm:$0xff]
        %v1799 = vld [vmem:[%s1780 + $0x19] sm:$0xff]
        %v1800 = vld [vmem:[%s1780 + $0x21] sm:$0xff]
        %v1801 = vld [vmem:[%s1780 + $0x31] sm:$0xff]
        %v1802 = vld [vmem:[%s1780 + $0x39] sm:$0xff]
        %v1803 = vld [vmem:[%s1780 + $0x49] sm:$0xff]
        %v1804 = vld [vmem:[%s1780 + $0x51] sm:$0xff]
        %v1805 = vld [vmem:[%s1780 + $0x61] sm:$0xff]
        %v1806 = vld [vmem:[%s1780 + $0x69] sm:$0xff]
        %v1807 = vld [vmem:[%s1780 + $0x79] sm:$0xff]
        %v1808 = vld [vmem:[%s1780 + $0x81] sm:$0xff]
        %v1809 = vld [vmem:[%s1780 + $0x91] sm:$0xff]
        %v1810 = vld [vmem:[%s1780 + $0x99] sm:$0xff]
        %v1811 = vld [vmem:[%s1780 + $0xa9] sm:$0xff]
        %v1812 = vld [vmem:[%s1780 + $0xb1] sm:$0xff]
        %v1813 = vld [vmem:[%s1780 + $0x2] sm:$0xff]
        %v1814 = vld [vmem:[%s1780 + $0xa] sm:$0xff]
        %v1815 = vld [vmem:[%s1780 + $0x1a] sm:$0xff]
        %v1816 = vld [vmem:[%s1780 + $0x22] sm:$0xff]
        %v1817 = vld [vmem:[%s1780 + $0x32] sm:$0xff]
        %v1818 = vld [vmem:[%s1780 + $0x3a] sm:$0xff]
        %v1819 = vld [vmem:[%s1780 + $0x4a] sm:$0xff]
        %v1820 = vld [vmem:[%s1780 + $0x52] sm:$0xff]
        %v1821 = vld [vmem:[%s1780 + $0x62] sm:$0xff]
        %v1822 = vld [vmem:[%s1780 + $0x6a] sm:$0xff]
        %v1823 = vld [vmem:[%s1780 + $0x7a] sm:$0xff]
        %v1824 = vld [vmem:[%s1780 + $0x82] sm:$0xff]
        %v1825 = vld [vmem:[%s1780 + $0x92] sm:$0xff]
        %v1826 = vld [vmem:[%s1780 + $0x9a] sm:$0xff]
        %v1827 = vld [vmem:[%s1780 + $0xaa] sm:$0xff]
        %v1828 = vld [vmem:[%s1780 + $0xb2] sm:$0xff]
        %1845 = vrot.lane.b32.xlu0 %v1797, 4
        %v1846 = vpop.permute.xlu0 %1845
        %1847 = vrot.lane.b32.xlu0 %v1798, 4
        %v1848 = vpop.permute.xlu0 %1847
        %1849 = vrot.lane.b32.xlu0 %v1799, 4
        %v1850 = vpop.permute.xlu0 %1849
        %1851 = vrot.lane.b32.xlu0 %v1800, 4
        %v1852 = vpop.permute.xlu0 %1851
        %1853 = vrot.lane.b32.xlu0 %v1801, 4
        %v1854 = vpop.permute.xlu0 %1853
        %1855 = vrot.lane.b32.xlu0 %v1802, 4
        %v1856 = vpop.permute.xlu0 %1855
        %1857 = vrot.lane.b32.xlu0 %v1803, 4
        %v1858 = vpop.permute.xlu0 %1857
        %1859 = vrot.lane.b32.xlu0 %v1804, 4
        %v1860 = vpop.permute.xlu0 %1859
        %1861 = vrot.lane.b32.xlu0 %v1805, 4
        %v1862 = vpop.permute.xlu0 %1861
        %1863 = vrot.lane.b32.xlu0 %v1806, 4
        %v1864 = vpop.permute.xlu0 %1863
        %1865 = vrot.lane.b32.xlu0 %v1807, 4
        %v1866 = vpop.permute.xlu0 %1865
        %1867 = vrot.lane.b32.xlu0 %v1808, 4
        %v1868 = vpop.permute.xlu0 %1867
        %1869 = vrot.lane.b32.xlu0 %v1809, 4
        %v1870 = vpop.permute.xlu0 %1869
        %1871 = vrot.lane.b32.xlu0 %v1810, 4
        %v1872 = vpop.permute.xlu0 %1871
        %1873 = vrot.lane.b32.xlu0 %v1811, 4
        %v1874 = vpop.permute.xlu0 %1873
        %1875 = vrot.lane.b32.xlu0 %v1812, 4
        %v1876 = vpop.permute.xlu0 %1875
        %1909 = vrot.lane.b32.xlu0 %v1813, 8
        %v1910 = vpop.permute.xlu0 %1909
        %1911 = vrot.lane.b32.xlu0 %v1814, 8
        %v1912 = vpop.permute.xlu0 %1911
        %1913 = vrot.lane.b32.xlu0 %v1815, 8
        %v1914 = vpop.permute.xlu0 %1913
        %1915 = vrot.lane.b32.xlu0 %v1816, 8
        %v1916 = vpop.permute.xlu0 %1915
        %1917 = vrot.lane.b32.xlu0 %v1817, 8
        %v1918 = vpop.permute.xlu0 %1917
        %1919 = vrot.lane.b32.xlu0 %v1818, 8
        %v1920 = vpop.permute.xlu0 %1919
        %1921 = vrot.lane.b32.xlu0 %v1819, 8
        %v1922 = vpop.permute.xlu0 %1921
        %1923 = vrot.lane.b32.xlu0 %v1820, 8
        %v1924 = vpop.permute.xlu0 %1923
        %1925 = vrot.lane.b32.xlu0 %v1821, 8
        %v1926 = vpop.permute.xlu0 %1925
        %1927 = vrot.lane.b32.xlu0 %v1822, 8
        %v1928 = vpop.permute.xlu0 %1927
        %1929 = vrot.lane.b32.xlu0 %v1823, 8
        %v1930 = vpop.permute.xlu0 %1929
        %1931 = vrot.lane.b32.xlu0 %v1824, 8
        %v1932 = vpop.permute.xlu0 %1931
        %1933 = vrot.lane.b32.xlu0 %v1825, 8
        %v1934 = vpop.permute.xlu0 %1933
        %1935 = vrot.lane.b32.xlu0 %v1826, 8
        %v1936 = vpop.permute.xlu0 %1935
        %1937 = vrot.lane.b32.xlu0 %v1827, 8
        %v1938 = vpop.permute.xlu0 %1937
        %1939 = vrot.lane.b32.xlu0 %v1828, 8
        %v1940 = vpop.permute.xlu0 %1939
        %v1957 = vsel %vm456, %v1781, %v1846
        %v1958 = vsel %vm456, %v1782, %v1848
        %v1959 = vsel %vm456, %v1783, %v1850
        %v1960 = vsel %vm456, %v1784, %v1852
        %v1961 = vsel %vm456, %v1785, %v1854
        %v1962 = vsel %vm456, %v1786, %v1856
        %v1963 = vsel %vm456, %v1787, %v1858
        %v1964 = vsel %vm456, %v1788, %v1860
        %v1965 = vsel %vm456, %v1789, %v1862
        %v1966 = vsel %vm456, %v1790, %v1864
        %v1967 = vsel %vm456, %v1791, %v1866
        %v1968 = vsel %vm456, %v1792, %v1868
        %v1969 = vsel %vm456, %v1793, %v1870
        %v1970 = vsel %vm456, %v1794, %v1872
        %v1971 = vsel %vm456, %v1795, %v1874
        %v1972 = vsel %vm456, %v1796, %v1876
        %v1973 = vsel %vm1091, %v1957, %v1910
        %v1974 = vsel %vm1091, %v1958, %v1912
        %v1975 = vsel %vm1091, %v1959, %v1914
        %v1976 = vsel %vm1091, %v1960, %v1916
        %v1977 = vsel %vm1091, %v1961, %v1918
        %v1978 = vsel %vm1091, %v1962, %v1920
        %v1979 = vsel %vm1091, %v1963, %v1922
        %v1980 = vsel %vm1091, %v1964, %v1924
        %v1981 = vsel %vm1091, %v1965, %v1926
        %v1982 = vsel %vm1091, %v1966, %v1928
        %v1983 = vsel %vm1091, %v1967, %v1930
        %v1984 = vsel %vm1091, %v1968, %v1932
        %v1985 = vsel %vm1091, %v1969, %v1934
        %v1986 = vsel %vm1091, %v1970, %v1936
        %v1987 = vsel %vm1091, %v1971, %v1938
        %v1988 = vsel %vm1091, %v1972, %v1940
        %s1989 = scalar_lea.vmem %s5, 32
        %v1990 = vld [vmem:[%s1989] sm:$0xff]
        %v1991 = vld [vmem:[%s1989 + $0x8] sm:$0xf]
        %v1993 = vsel %vm1110, %v1973, 0
        %v1996 = vsel %vm1110, %v1974, 0
        %v1999 = vsel %vm1110, %v1975, 0
        %v2002 = vsel %vm1110, %v1976, 0
        %v2005 = vsel %vm1110, %v1977, 0
        %v2008 = vsel %vm1110, %v1978, 0
        %v2011 = vsel %vm1110, %v1979, 0
        %v2014 = vsel %vm1110, %v1980, 0
        %v2017 = vsel %vm1110, %v1981, 0
        %v2020 = vsel %vm1110, %v1982, 0
        %v2023 = vsel %vm1110, %v1983, 0
        %v2026 = vsel %vm1110, %v1984, 0
        %v2029 = vsel %vm1110, %v1985, 0
        %v2032 = vsel %vm1110, %v1986, 0
        %v2035 = vsel %vm1110, %v1987, 0
        %v2038 = vsel %vm1110, %v1988, 0
        %v2041 = vsel %vm1159, %v1991, 0
        %2043 = vmatprep.subr.mxu0 0.0
        %2044 = vmatpush1.msra.mxu0 %v1990
        %2045 = vmatprep.subr.mxu0 0.0
        %2046 = vmatpush1.msra.mxu0 %v2041
        %2047 = vmatprep.subr.mxu0 0.0
        %2048 = vmatpush1.msra.mxu0 0.0
        %2049 = vmatprep.subr.mxu0 0.0
        %2050 = vmatpush1.msra.mxu0 0.0
        %2051 = vmatprep.subr.mxu0 0.0
        %2052 = vmatpush1.msra.mxu0 0.0
        %2053 = vmatprep.subr.mxu0 0.0
        %2054 = vmatpush1.msra.mxu0 0.0
        %2055 = vmatprep.subr.mxu0 0.0
        %2056 = vmatpush1.msra.mxu0 0.0
        %2057 = vmatprep.subr.mxu0 0.0
        %2058 = vmatpush1.msra.mxu0 0.0
        %2059 = vmatprep.subr.mxu0 0.0
        %2060 = vmatpush1.msra.mxu0 0.0
        %2061 = vmatprep.subr.mxu0 0.0
        %2062 = vmatpush1.msra.mxu0 0.0
        %2063 = vmatprep.subr.mxu0 0.0
        %2064 = vmatpush1.msra.mxu0 0.0
        %2065 = vmatprep.subr.mxu0 0.0
        %2066 = vmatpush1.msra.mxu0 0.0
        %2067 = vmatprep.subr.mxu0 0.0
        %2068 = vmatpush1.msra.mxu0 0.0
        %2069 = vmatprep.subr.mxu0 0.0
        %2070 = vmatpush1.msra.mxu0 0.0
        %2071 = vmatprep.subr.mxu0 0.0
        %2072 = vmatpush1.msra.mxu0 0.0
        %2073 = vmatprep.subr.mxu0 0.0
        %2074 = vmatpush1.msra.mxu0 0.0
        %2075 = vmatprep.subr.mxu0 0.0
        %2076 = vmatpush1.msra.mxu0 0.0
        %2077 = vmatprep.subr.mxu0 0.0
        %2078 = vmatpush1.msra.mxu0 0.0
        %2079 = vmatprep.subr.mxu0 0.0
        %2080 = vmatpush1.msra.mxu0 0.0
        %2081 = vmatprep.subr.mxu0 0.0
        %2082 = vmatpush1.msra.mxu0 0.0
        %2083 = vmatprep.subr.mxu0 0.0
        %2084 = vmatpush1.msra.mxu0 0.0
        %2085 = vmatprep.subr.mxu0 0.0
        %2086 = vmatpush1.msra.mxu0 0.0
        %2087 = vmatprep.subr.mxu0 0.0
        %2088 = vmatpush1.msra.mxu0 0.0
        %2089 = vmatprep.subr.mxu0 0.0
        %2090 = vmatpush1.msra.mxu0 0.0
        %2091 = vmatprep.subr.mxu0 0.0
        %2092 = vmatpush1.msra.mxu0 0.0
        %2093 = vmatprep.subr.mxu0 0.0
        %2094 = vmatpush1.msra.mxu0 0.0
        %2095 = vmatprep.subr.mxu0 0.0
        %2096 = vmatpush1.msra.mxu0 0.0
        %2097 = vmatprep.subr.mxu0 0.0
        %2098 = vmatpush1.msra.mxu0 0.0
        %2099 = vmatprep.subr.mxu0 0.0
        %2100 = vmatpush1.msra.mxu0 0.0
        %2101 = vmatprep.subr.mxu0 0.0
        %2102 = vmatpush1.msra.mxu0 0.0
        %2103 = vmatprep.subr.mxu0 0.0
        %2104 = vmatpush1.msra.mxu0 0.0
        %2105 = vmatprep.subr.mxu0 0.0
        %2106 = vmatpush1.msra.mxu0 0.0
        %2107 = vmatprep.mubr.f32.mxu0 0.0
        %2108 = vmatmul.mubr.f32.gmra.mrb[0].mxu0 %v1993
        %v2109 = vpop.f32.mrb[0].mxu0
        %v2110 = vadd.f32 0.0, %v2109
        %v2111 = vpop.f32.mrb[0].mxu0
        %2112 = vmatprep.mubr.f32.mxu0 0.0
        %2113 = vmatmul.mubr.f32.gmra.mrb[0].mxu0 %v1996
        %v2114 = vpop.f32.mrb[0].mxu0
        %v2115 = vadd.f32 0.0, %v2114
        %v2116 = vpop.f32.mrb[0].mxu0
        %2117 = vmatprep.mubr.f32.mxu0 0.0
        %2118 = vmatmul.mubr.f32.gmra.mrb[0].mxu0 %v1999
        %v2119 = vpop.f32.mrb[0].mxu0
        %v2120 = vadd.f32 0.0, %v2119
        %v2121 = vpop.f32.mrb[0].mxu0
        %2122 = vmatprep.mubr.f32.mxu0 0.0
        %2123 = vmatmul.mubr.f32.gmra.mrb[0].mxu0 %v2002
        %v2124 = vpop.f32.mrb[0].mxu0
        %v2125 = vadd.f32 0.0, %v2124
        %v2126 = vpop.f32.mrb[0].mxu0
        %2127 = vmatprep.mubr.f32.mxu0 0.0
        %2128 = vmatmul.mubr.f32.gmra.mrb[0].mxu0 %v2005
        %v2129 = vpop.f32.mrb[0].mxu0
        %v2130 = vadd.f32 0.0, %v2129
        %v2131 = vpop.f32.mrb[0].mxu0
        %2132 = vmatprep.mubr.f32.mxu0 0.0
        %2133 = vmatmul.mubr.f32.gmra.mrb[0].mxu0 %v2008
        %v2134 = vpop.f32.mrb[0].mxu0
        %v2135 = vadd.f32 0.0, %v2134
        %v2136 = vpop.f32.mrb[0].mxu0
        %2137 = vmatprep.mubr.f32.mxu0 0.0
        %2138 = vmatmul.mubr.f32.gmra.mrb[0].mxu0 %v2011
        %v2139 = vpop.f32.mrb[0].mxu0
        %v2140 = vadd.f32 0.0, %v2139
        %v2141 = vpop.f32.mrb[0].mxu0
        %2142 = vmatprep.mubr.f32.mxu0 0.0
        %2143 = vmatmul.mubr.f32.gmra.mrb[0].mxu0 %v2014
        %v2144 = vpop.f32.mrb[0].mxu0
        %v2145 = vadd.f32 0.0, %v2144
        %v2146 = vpop.f32.mrb[0].mxu0
        %2147 = vmatprep.mubr.f32.mxu0 0.0
        %2148 = vmatmul.mubr.f32.gmra.mrb[0].mxu0 %v2017
        %v2149 = vpop.f32.mrb[0].mxu0
        %v2150 = vadd.f32 0.0, %v2149
        %v2151 = vpop.f32.mrb[0].mxu0
        %2152 = vmatprep.mubr.f32.mxu0 0.0
        %2153 = vmatmul.mubr.f32.gmra.mrb[0].mxu0 %v2020
        %v2154 = vpop.f32.mrb[0].mxu0
        %v2155 = vadd.f32 0.0, %v2154
        %v2156 = vpop.f32.mrb[0].mxu0
        %2157 = vmatprep.mubr.f32.mxu0 0.0
        %2158 = vmatmul.mubr.f32.gmra.mrb[0].mxu0 %v2023
        %v2159 = vpop.f32.mrb[0].mxu0
        %v2160 = vadd.f32 0.0, %v2159
        %v2161 = vpop.f32.mrb[0].mxu0
        %2162 = vmatprep.mubr.f32.mxu0 0.0
        %2163 = vmatmul.mubr.f32.gmra.mrb[0].mxu0 %v2026
        %v2164 = vpop.f32.mrb[0].mxu0
        %v2165 = vadd.f32 0.0, %v2164
        %v2166 = vpop.f32.mrb[0].mxu0
        %2167 = vmatprep.mubr.f32.mxu0 0.0
        %2168 = vmatmul.mubr.f32.gmra.mrb[0].mxu0 %v2029
        %v2169 = vpop.f32.mrb[0].mxu0
        %v2170 = vadd.f32 0.0, %v2169
        %v2171 = vpop.f32.mrb[0].mxu0
        %2172 = vmatprep.mubr.f32.mxu0 0.0
        %2173 = vmatmul.mubr.f32.gmra.mrb[0].mxu0 %v2032
        %v2174 = vpop.f32.mrb[0].mxu0
        %v2175 = vadd.f32 0.0, %v2174
        %v2176 = vpop.f32.mrb[0].mxu0
        %2177 = vmatprep.mubr.f32.mxu0 0.0
        %2178 = vmatmul.mubr.f32.gmra.mrb[0].mxu0 %v2035
        %v2179 = vpop.f32.mrb[0].mxu0
        %v2180 = vadd.f32 0.0, %v2179
        %v2181 = vpop.f32.mrb[0].mxu0
        %2182 = vmatprep.mubr.f32.mxu0 0.0
        %2183 = vmatmul.mubr.f32.gmra.mrb[0].mxu0 %v2038
        %v2184 = vpop.f32.mrb[0].mxu0
        %v2185 = vadd.f32 0.0, %v2184
        %v2186 = vpop.f32.mrb[0].mxu0
        %2187 = vdwg.mxu0
        %v2188 = vld [vmem:[#allocation3] sm:$0xff]
        %v2189 = vld [vmem:[#allocation3 + $0x8] sm:$0xff]
        %v2190 = vld [vmem:[#allocation3 + $0x10] sm:$0xff]
        %v2191 = vld [vmem:[#allocation3 + $0x18] sm:$0xff]
        %v2192 = vld [vmem:[#allocation3 + $0x20] sm:$0xff]
        %v2193 = vld [vmem:[#allocation3 + $0x28] sm:$0xff]
        %v2194 = vld [vmem:[#allocation3 + $0x30] sm:$0xff]
        %v2195 = vld [vmem:[#allocation3 + $0x38] sm:$0xff]
        %v2196 = vld [vmem:[#allocation3 + $0x40] sm:$0xff]
        %v2197 = vld [vmem:[#allocation3 + $0x48] sm:$0xff]
        %v2198 = vld [vmem:[#allocation3 + $0x50] sm:$0xff]
        %v2199 = vld [vmem:[#allocation3 + $0x58] sm:$0xff]
        %v2200 = vld [vmem:[#allocation3 + $0x60] sm:$0xff]
        %v2201 = vld [vmem:[#allocation3 + $0x68] sm:$0xff]
        %v2202 = vld [vmem:[#allocation3 + $0x70] sm:$0xff]
        %v2203 = vld [vmem:[#allocation3 + $0x78] sm:$0xff]
        %v2204 = vadd.f32 %v2188, %v2110
        %v2205 = vadd.f32 %v2189, %v2115
        %v2206 = vadd.f32 %v2190, %v2120
        %v2207 = vadd.f32 %v2191, %v2125
        %v2208 = vadd.f32 %v2192, %v2130
        %v2209 = vadd.f32 %v2193, %v2135
        %v2210 = vadd.f32 %v2194, %v2140
        %v2211 = vadd.f32 %v2195, %v2145
        %v2212 = vadd.f32 %v2196, %v2150
        %v2213 = vadd.f32 %v2197, %v2155
        %v2214 = vadd.f32 %v2198, %v2160
        %v2215 = vadd.f32 %v2199, %v2165
        %v2216 = vadd.f32 %v2200, %v2170
        %v2217 = vadd.f32 %v2201, %v2175
        %v2218 = vadd.f32 %v2202, %v2180
        %v2219 = vadd.f32 %v2203, %v2185
        %2220 = vst.msk [vmem:[#allocation3] sm:$0xff] %vm1308, %v2204
        %2221 = vst.msk [vmem:[#allocation3 + $0x8] sm:$0xff] %vm1308, %v2205
        %2222 = vst.msk [vmem:[#allocation3 + $0x10] sm:$0xff] %vm1308, %v2206
        %2223 = vst.msk [vmem:[#allocation3 + $0x18] sm:$0xff] %vm1308, %v2207
        %2224 = vst.msk [vmem:[#allocation3 + $0x20] sm:$0xff] %vm1308, %v2208
        %2225 = vst.msk [vmem:[#allocation3 + $0x28] sm:$0xff] %vm1308, %v2209
        %2226 = vst.msk [vmem:[#allocation3 + $0x30] sm:$0xff] %vm1308, %v2210
        %2227 = vst.msk [vmem:[#allocation3 + $0x38] sm:$0xff] %vm1308, %v2211
        %2228 = vst.msk [vmem:[#allocation3 + $0x40] sm:$0xff] %vm1308, %v2212
        %2229 = vst.msk [vmem:[#allocation3 + $0x48] sm:$0xff] %vm1308, %v2213
        %2230 = vst.msk [vmem:[#allocation3 + $0x50] sm:$0xff] %vm1308, %v2214
        %2231 = vst.msk [vmem:[#allocation3 + $0x58] sm:$0xff] %vm1308, %v2215
        %2232 = vst.msk [vmem:[#allocation3 + $0x60] sm:$0xff] %vm1308, %v2216
        %2233 = vst.msk [vmem:[#allocation3 + $0x68] sm:$0xff] %vm1308, %v2217
        %2234 = vst.msk [vmem:[#allocation3 + $0x70] sm:$0xff] %vm1308, %v2218
        %2235 = vst.msk [vmem:[#allocation3 + $0x78] sm:$0xff] %vm1308, %v2219
        %v2236 = vld [vmem:[#allocation3] sm:$0xff]
        %v2237 = vld [vmem:[#allocation3 + $0x8] sm:$0xff]
        %v2238 = vld [vmem:[#allocation3 + $0x10] sm:$0xff]
        %v2239 = vld [vmem:[#allocation3 + $0x18] sm:$0xff]
        %v2240 = vld [vmem:[#allocation3 + $0x20] sm:$0xff]
        %v2241 = vld [vmem:[#allocation3 + $0x28] sm:$0xff]
        %v2242 = vld [vmem:[#allocation3 + $0x30] sm:$0xff]
        %v2243 = vld [vmem:[#allocation3 + $0x38] sm:$0xff]
        %v2244 = vld [vmem:[#allocation3 + $0x40] sm:$0xff]
        %v2245 = vld [vmem:[#allocation3 + $0x48] sm:$0xff]
        %v2246 = vld [vmem:[#allocation3 + $0x50] sm:$0xff]
        %v2247 = vld [vmem:[#allocation3 + $0x58] sm:$0xff]
        %v2248 = vld [vmem:[#allocation3 + $0x60] sm:$0xff]
        %v2249 = vld [vmem:[#allocation3 + $0x68] sm:$0xff]
        %v2250 = vld [vmem:[#allocation3 + $0x70] sm:$0xff]
        %v2251 = vld [vmem:[#allocation3 + $0x78] sm:$0xff]
        %v2252 = vld [vmem:[%s6] sm:$0x1]
        %v2254 = vlaneseq
        %v2255 = vshrl.u32 %v2254, 7
        %v2256 = vsub.s32 0, %v2255
        %v2257 = vrot.slane %v2252, %v2256
        %v2259 = vadd.f32 %v2236, %v2257
        %v2260 = vadd.f32 %v2237, %v2257
        %v2261 = vadd.f32 %v2238, %v2257
        %v2262 = vadd.f32 %v2239, %v2257
        %v2263 = vadd.f32 %v2240, %v2257
        %v2264 = vadd.f32 %v2241, %v2257
        %v2265 = vadd.f32 %v2242, %v2257
        %v2266 = vadd.f32 %v2243, %v2257
        %v2267 = vadd.f32 %v2244, %v2257
        %v2268 = vadd.f32 %v2245, %v2257
        %v2269 = vadd.f32 %v2246, %v2257
        %v2270 = vadd.f32 %v2247, %v2257
        %v2271 = vadd.f32 %v2248, %v2257
        %v2272 = vadd.f32 %v2249, %v2257
        %v2273 = vadd.f32 %v2250, %v2257
        %v2274 = vadd.f32 %v2251, %v2257
        %2275 = vst.msk [vmem:[%s388] sm:$0xff] %vm1308, %v2259
        %2276 = vst.msk [vmem:[%s388 + $0x8] sm:$0xff] %vm1308, %v2260
        %2277 = vst.msk [vmem:[%s388 + $0x10] sm:$0xff] %vm1308, %v2261
        %2278 = vst.msk [vmem:[%s388 + $0x18] sm:$0xff] %vm1308, %v2262
        %2279 = vst.msk [vmem:[%s388 + $0x20] sm:$0xff] %vm1308, %v2263
        %2280 = vst.msk [vmem:[%s388 + $0x28] sm:$0xff] %vm1308, %v2264
        %2281 = vst.msk [vmem:[%s388 + $0x30] sm:$0xff] %vm1308, %v2265
        %2282 = vst.msk [vmem:[%s388 + $0x38] sm:$0xff] %vm1308, %v2266
        %2283 = vst.msk [vmem:[%s388 + $0x40] sm:$0xff] %vm1308, %v2267
        %2284 = vst.msk [vmem:[%s388 + $0x48] sm:$0xff] %vm1308, %v2268
        %2285 = vst.msk [vmem:[%s388 + $0x50] sm:$0xff] %vm1308, %v2269
        %2286 = vst.msk [vmem:[%s388 + $0x58] sm:$0xff] %vm1308, %v2270
        %2287 = vst.msk [vmem:[%s388 + $0x60] sm:$0xff] %vm1308, %v2271
        %2288 = vst.msk [vmem:[%s388 + $0x68] sm:$0xff] %vm1308, %v2272
        %2289 = vst.msk [vmem:[%s388 + $0x70] sm:$0xff] %vm1308, %v2273
        %2290 = vst.msk [vmem:[%s388 + $0x78] sm:$0xff] %vm1308, %v2274
        %s2291 = sand.u32 %s227, 1
        %s2292 = scalar_lea.sflag [#allocation5], %s2291
        %s2293 = sand.u32 %s227, 1
        %s2294 = smul.addr %s2293, 128
        %s2295 = scalar_lea.vmem [#allocation4], %s2294
        // Predicated region
        $region57: #{one_three_conv_forward.1} parent=47 // pred_check
          %p2296 = pneg %p237
        $region58: #{one_three_conv_forward.1} parent=47 // pred_check_branch
          %2298 = sbr.rel (%p2296) target = $region60
        $region59: #{one_three_conv_forward.1} parent=47 // pred_region
          %s2299 = smul.u32 8, %s26
          %s2301 = ssub.s32 2048, 2048
          %2302 = vsyncadd %s2292, %s2301
          %s2303 = smul.addr %s2299, 2
          %s2304 = smul.addr %s25, 32
          %s2305 = sadd.s32 %s2303, %s2304
          %s2306 = smul.addr %s2305, 128
          %s2307 = scalar_lea.hbm %s7, %s2306
          %s2308 = sshll.u32 %s2295, 4
          %s2309 = int_to_ptr.vmem [resolvable:$true] %s2308
          %2314 = dma.vmem_to_hbm [thread:$0]  %s2309, 2048, %s2307, %s2292, 128, 128, 8
        $region60: #{one_three_conv_forward.1} parent=47 // pred_fallthru
          _
      $region48: #{one_three_conv_forward.1} parent=5 // pred_fallthru
        _
      %p2315 = scmp.le.s32.totalorder 2, %s16
      // Predicated region
      $region61: #{one_three_conv_forward.1} parent=5 // pred_check
        %p2316 = pneg %p2315
      $region62: #{one_three_conv_forward.1} parent=5 // pred_check_branch
        %2318 = sbr.rel (%p2316) target = $region64
      $region63: #{one_three_conv_forward.1} parent=5 // pred_region
        %s2319 = ssub.s32 %s16, 2
        // Predicated region
        $region65: #{one_three_conv_forward.1} parent=63 // pred_check
          %p2320 = pneg %p243
        $region66: #{one_three_conv_forward.1} parent=63 // pred_check_branch
          %2322 = sbr.rel (%p2320) target = $region68
        $region67: #{one_three_conv_forward.1} parent=63 // pred_region
          %s2323 = sand.u32 %s228, 1
          %s2324 = scalar_lea.sflag [#allocation5], %s2323
          %s2325 = sand.u32 %s228, 1
          %s2326 = smul.addr %s2325, 128
          %s2327 = scalar_lea.vmem [#allocation4], %s2326
          %2328 = dma.done %s2324, 2048
        $region68: #{one_three_conv_forward.1} parent=63 // pred_fallthru
          _
      $region64: #{one_three_conv_forward.1} parent=5 // pred_fallthru
        _
    $region6: #{one_three_conv_forward.1} parent=1 // loop_footer
      %s20 = sadd.s32 1, %s16
    $region7: #{one_three_conv_forward.1} parent=1 // loop_footer_branch
      %15 = sbr.rel target = $region3
    $region8: #{one_three_conv_forward.1} parent=1 // loop_exit
      _
    %2329 = vsyncpa [#allocation5], 1
    %s2330 = scalar_lea.sflag [#allocation5], 1
    %2331 = vsyncpa %s2330, 1

</llo_original>
